<compile_context>
chip_gen: v6e
topology: v6e:2x2x1
jax: 0.10.0
libtpu: 0.0.40
codegen_flags: <defaults>
</compile_context>

<pallas_src>
import functools

import jax
import jax.numpy as jnp
from jax.experimental import pallas as pl
from jax.experimental.pallas import tpu as pltpu

HIDDEN = 512            # hard-coded in the PyTorch module
BN_EPS = 1e-5           # nn.BatchNorm1d default eps
NORM_EPS = 1e-12        # F.normalize default eps

TILE_B_MAX = 256        # MXU-native M on v6e/v7x (128 would be native on v5e)
VMEM_LIMIT_BYTES = 48 * 1024 * 1024   # leave headroom under v7x's 64 MiB physical VMEM


def _round_up(n, m):
    return (n + m - 1) // m * m


# ---------------------------------------------------------------------------
# Stage 1: h = x @ w1 (bf16 MXU, f32 acc) + per-tile BN partial statistics.
# ---------------------------------------------------------------------------
def _stage1_kernel(x_ref, w1_ref, h_ref, sum_ref, sumsq_ref):
    h = jnp.dot(x_ref[...], w1_ref[...], preferred_element_type=jnp.float32)  # (TB, 512) f32
    h_ref[...] = h
    # Per-feature partial sums for this batch tile (zero-padded rows contribute 0).
    sum_ref[...] = jnp.sum(h, axis=0, keepdims=True)[None]          # (1, 1, 512)
    sumsq_ref[...] = jnp.sum(h * h, axis=0, keepdims=True)[None]    # (1, 1, 512)


# ---------------------------------------------------------------------------
# Stage 2: folded BN (scale/shift) + ReLU + Linear(512, D_out) + L2 normalize.
# ---------------------------------------------------------------------------
def _stage2_kernel(h_ref, scale_ref, shift_ref, w2_ref, b2_ref, o_ref):
    # BatchNorm folded into one scale/shift, applied in f32; ReLU.
    h = jnp.maximum(h_ref[...] * scale_ref[...] + shift_ref[...], 0.0)
    # Linear(512, D_out, bias=True): bf16 MXU operands, f32 accumulation.
    y = jnp.dot(h.astype(jnp.bfloat16), w2_ref[...],
                preferred_element_type=jnp.float32)
    y = y + b2_ref[...]
    # F.normalize(dim=1): y / max(||y||, eps) == y * rsqrt(max(||y||^2, eps^2)).
    # rsqrt goes to the EUP (own VLIW slot) instead of burning VALU divide slots.
    sq = jnp.sum(y * y, axis=1, keepdims=True)
    o_ref[...] = y * jax.lax.rsqrt(jnp.maximum(sq, NORM_EPS * NORM_EPS))


def projection_forward(x, w1, gamma, beta, w2, b2, *, tile_b=None):
    """Forward pass of Projection. x: (B, D_in) f32. Returns (B, D_out) f32."""
    B, D_in = x.shape
    D_out = w2.shape[1]

    if tile_b is None:
        tile_b = min(TILE_B_MAX, _round_up(B, 8))
    tile_b = _round_up(tile_b, 8)

    B_pad = _round_up(B, tile_b)
    D_in_pad = _round_up(D_in, 128)
    D_out_pad = _round_up(D_out, 128)
    nb = B_pad // tile_b

    # Zero-pad to MXU/lane-aligned shapes.  Zero rows/cols do not perturb the
    # matmuls, and BN statistics are divided by the true batch size B below.
    x_p = jnp.zeros((B_pad, D_in_pad), jnp.bfloat16).at[:B, :D_in].set(
        x.astype(jnp.bfloat16))
    w1_p = jnp.zeros((D_in_pad, HIDDEN), jnp.bfloat16).at[:D_in, :].set(
        w1.astype(jnp.bfloat16))
    w2_p = jnp.zeros((HIDDEN, D_out_pad), jnp.bfloat16).at[:, :D_out].set(
        w2.astype(jnp.bfloat16))
    b2_p = jnp.zeros((1, D_out_pad), jnp.float32).at[:, :D_out].set(
        b2.reshape(1, D_out).astype(jnp.float32))

    # ---- Stage 1: first matmul + per-tile BN partial sums ------------------
    h, part_sum, part_sumsq = pl.pallas_call(
        _stage1_kernel,
        out_shape=(
            jax.ShapeDtypeStruct((B_pad, HIDDEN), jnp.float32),     # h (f32 for BN fidelity)
            jax.ShapeDtypeStruct((nb, 1, HIDDEN), jnp.float32),     # per-tile sum
            jax.ShapeDtypeStruct((nb, 1, HIDDEN), jnp.float32),     # per-tile sum of squares
        ),
        grid_spec=pltpu.PrefetchScalarGridSpec(
            num_scalar_prefetch=0,
            grid=(nb,),
            in_specs=[
                pl.BlockSpec((tile_b, D_in_pad), lambda i: (i, 0)),   # x tile (pipelined)
                pl.BlockSpec((D_in_pad, HIDDEN), lambda i: (0, 0)),   # w1 resident
            ],
            out_specs=[
                pl.BlockSpec((tile_b, HIDDEN), lambda i: (i, 0)),
                pl.BlockSpec((1, 1, HIDDEN), lambda i: (i, 0, 0)),
                pl.BlockSpec((1, 1, HIDDEN), lambda i: (i, 0, 0)),
            ],
        ),
        compiler_params=pltpu.CompilerParams(
            dimension_semantics=("parallel",),
            vmem_limit_bytes=VMEM_LIMIT_BYTES),
    )(x_p, w1_p)

    # ---- Tiny (512,) cross-tile reduction + BN fold (plain XLA; negligible) --
    bn_sum = jnp.sum(part_sum, axis=(0, 1))           # (512,)
    bn_sumsq = jnp.sum(part_sumsq, axis=(0, 1))       # (512,)
    mean = bn_sum / B                                  # true batch size (padding excluded)
    var = jnp.maximum(bn_sumsq / B - mean * mean, 0.0)  # biased (training-mode) variance
    scale = gamma.reshape(-1).astype(jnp.float32) * jax.lax.rsqrt(var + BN_EPS)
    shift = beta.reshape(-1).astype(jnp.float32) - mean * scale
    scale = scale.reshape(1, HIDDEN)
    shift = shift.reshape(1, HIDDEN)

    # ---- Stage 2: BN apply + ReLU + second matmul + normalize ---------------
    out = pl.pallas_call(
        _stage2_kernel,
        out_shape=jax.ShapeDtypeStruct((B_pad, D_out_pad), jnp.float32),
        grid_spec=pltpu.PrefetchScalarGridSpec(
            num_scalar_prefetch=0,
            grid=(nb,),
            in_specs=[
                pl.BlockSpec((tile_b, HIDDEN), lambda i: (i, 0)),      # h tile (pipelined)
                pl.BlockSpec((1, HIDDEN), lambda i: (0, 0)),           # scale resident
                pl.BlockSpec((1, HIDDEN), lambda i: (0, 0)),           # shift resident
                pl.BlockSpec((HIDDEN, D_out_pad), lambda i: (0, 0)),   # w2 resident
                pl.BlockSpec((1, D_out_pad), lambda i: (0, 0)),        # b2 resident
            ],
            out_specs=pl.BlockSpec((tile_b, D_out_pad), lambda i: (i, 0)),
        ),
        compiler_params=pltpu.CompilerParams(
            dimension_semantics=("parallel",),
            vmem_limit_bytes=VMEM_LIMIT_BYTES),
    )(h, scale, shift, w2_p, b2_p)

    return out[:B, :D_out]


def _reference(x, w1, gamma, beta, w2, b2):
    """Pure-JAX f32 reference matching the PyTorch module's forward."""
    h = x @ w1
    mean = jnp.mean(h, axis=0, keepdims=True)
    var = jnp.mean((h - mean) ** 2, axis=0, keepdims=True)
    h = (h - mean) * jax.lax.rsqrt(var + BN_EPS) * gamma.reshape(1, -1) + beta.reshape(1, -1)
    h = jnp.maximum(h, 0.0)
    y = h @ w2 + b2.reshape(1, -1)
    n = jnp.maximum(jnp.linalg.norm(y, axis=1, keepdims=True), NORM_EPS)
    return y / n


if __name__ == "__main__":
    key = jax.random.PRNGKey(0)
    kx, k1, k2, k3, kg, kb = jax.random.split(key, 6)

    # Small demo shapes; tile_b=16 forces the multi-tile (batch-padded) path.
    B, D_IN, D_OUT = 40, 256, 128

    x = jax.random.normal(kx, (B, D_IN), jnp.float32)
    bound1 = 1.0 / jnp.sqrt(D_IN)
    w1 = jax.random.uniform(k1, (D_IN, HIDDEN), jnp.float32, -bound1, bound1)
    gamma = jax.random.uniform(kg, (HIDDEN,), jnp.float32, 0.5, 1.5)
    beta = 0.1 * jax.random.normal(kb, (HIDDEN,), jnp.float32)
    bound2 = 1.0 / jnp.sqrt(HIDDEN)
    w2 = jax.random.uniform(k2, (HIDDEN, D_OUT), jnp.float32, -bound2, bound2)
    b2 = jax.random.uniform(k3, (D_OUT,), jnp.float32, -bound2, bound2)

    fwd = jax.jit(functools.partial(projection_forward, tile_b=16))
    out = jax.block_until_ready(fwd(x, w1, gamma, beta, w2, b2))

    # Sanity: shape, unit-norm rows, and agreement with the f32 reference
    # (bf16 MXU operands -> loose tolerance).
    assert out.shape == (B, D_OUT)
    row_norms = jnp.linalg.norm(out, axis=1)
    assert bool(jnp.allclose(row_norms, 1.0, atol=1e-3))

    ref = _reference(x, w1, gamma, beta, w2, b2)
    max_err = float(jnp.max(jnp.abs(out - ref)))
    assert max_err < 3e-2, max_err

    print("KERNEL_OK")
</pallas_src>

<mosaic_0001>
module attributes {stable_mosaic.version = 11 : i64} {
  func.func @_stage1_kernel(%arg0: i32, %arg1: memref<16x256xbf16, #tpu.memory_space<vmem>>, %arg2: memref<256x512xbf16, #tpu.memory_space<vmem>>, %arg3: memref<16x512xf32, #tpu.memory_space<vmem>>, %arg4: memref<1x1x512xf32, #tpu.memory_space<vmem>>, %arg5: memref<1x1x512xf32, #tpu.memory_space<vmem>>) attributes {dimension_semantics = [#tpu.dimension_semantics<parallel>], iteration_bounds = array<i64: 3>, scalar_prefetch = 0 : i64, scratch_operands = 0 : i64, tpu.core_type = #tpu.core_type<tc>, window_params = [{transform_indices = @transform_0, window_bounds = array<i64: 16, 256>}, {pipeline_mode = #tpu.pipeline_mode<synchronous>, transform_indices = @transform_1, window_bounds = array<i64: 256, 512>}, {transform_indices = @transform_2, window_bounds = array<i64: 16, 512>}, {transform_indices = @transform_3, window_bounds = array<i64: 1, 1, 512>}, {transform_indices = @transform_4, window_bounds = array<i64: 1, 1, 512>}]} {
    %c0 = arith.constant 0 : index
    %c0_0 = arith.constant 0 : index
    %0 = vector.load %arg1[%c0, %c0_0] : memref<16x256xbf16, #tpu.memory_space<vmem>>, vector<16x256xbf16>
    %c0_1 = arith.constant 0 : index
    %c0_2 = arith.constant 0 : index
    %1 = vector.load %arg2[%c0_1, %c0_2] : memref<256x512xbf16, #tpu.memory_space<vmem>>, vector<256x512xbf16>
    %cst = arith.constant dense<0.000000e+00> : vector<16x512xf32>
    %2 = tpu.matmul %0, %1, %cst {dimension_numbers = #tpu.dot_dimension_numbers<[1], [0], [0], [1], [0, 0, 1, 1], [], []>} : vector<16x256xbf16>, vector<256x512xbf16>, vector<16x512xf32> -> vector<16x512xf32>
    %c0_3 = arith.constant 0 : index
    %c0_4 = arith.constant 0 : index
    %3 = vector.load %arg3[%c0_3, %c0_4] : memref<16x512xf32, #tpu.memory_space<vmem>>, vector<16x512xf32>
    tpu.vector_store %arg3[%c0_3, %c0_4], %2 {strides = array<i32>} : memref<16x512xf32, #tpu.memory_space<vmem>>, vector<16x512xf32>,
    %cst_5 = arith.constant dense<0.000000e+00> : vector<512xf32>
    %4 = vector.multi_reduction <add>, %2, %cst_5 [0] : vector<16x512xf32> to vector<512xf32>
    %5 = vector.shape_cast %4 : vector<512xf32> to vector<1x512xf32>
    %6 = vector.shape_cast %5 : vector<1x512xf32> to vector<1x1x512xf32>
    %c0_6 = arith.constant 0 : index
    %c0_7 = arith.constant 0 : index
    %c0_8 = arith.constant 0 : index
    %7 = vector.load %arg4[%c0_6, %c0_7, %c0_8] : memref<1x1x512xf32, #tpu.memory_space<vmem>>, vector<1x1x512xf32>
    tpu.vector_store %arg4[%c0_6, %c0_7, %c0_8], %6 {strides = array<i32>} : memref<1x1x512xf32, #tpu.memory_space<vmem>>, vector<1x1x512xf32>,
    %8 = arith.mulf %2, %2 : vector<16x512xf32>
    %cst_9 = arith.constant dense<0.000000e+00> : vector<512xf32>
    %9 = vector.multi_reduction <add>, %8, %cst_9 [0] : vector<16x512xf32> to vector<512xf32>
    %10 = vector.shape_cast %9 : vector<512xf32> to vector<1x512xf32>
    %11 = vector.shape_cast %10 : vector<1x512xf32> to vector<1x1x512xf32>
    %c0_10 = arith.constant 0 : index
    %c0_11 = arith.constant 0 : index
    %c0_12 = arith.constant 0 : index
    %12 = vector.load %arg5[%c0_10, %c0_11, %c0_12] : memref<1x1x512xf32, #tpu.memory_space<vmem>>, vector<1x1x512xf32>
    tpu.vector_store %arg5[%c0_10, %c0_11, %c0_12], %11 {strides = array<i32>} : memref<1x1x512xf32, #tpu.memory_space<vmem>>, vector<1x1x512xf32>,
    return
  }
  func.func @transform_0(%arg0: i32) -> (i32, i32) {
    %c0_i32 = arith.constant 0 : i32
    %c0_i32_0 = arith.constant 0 : i32
    return %arg0, %c0_i32 : i32, i32
  }
  func.func @transform_1(%arg0: i32) -> (i32, i32) {
    %c0_i32 = arith.constant 0 : i32
    %c0_i32_0 = arith.constant 0 : i32
    %c0_i32_1 = arith.constant 0 : i32
    return %c0_i32, %c0_i32_0 : i32, i32
  }
  func.func @transform_2(%arg0: i32) -> (i32, i32) {
    %c0_i32 = arith.constant 0 : i32
    %c0_i32_0 = arith.constant 0 : i32
    return %arg0, %c0_i32 : i32, i32
  }
  func.func @transform_3(%arg0: i32) -> (i32, i32, i32) {
    %c0_i32 = arith.constant 0 : i32
    %c0_i32_0 = arith.constant 0 : i32
    %c0_i32_1 = arith.constant 0 : i32
    return %arg0, %c0_i32, %c0_i32_0 : i32, i32, i32
  }
  func.func @transform_4(%arg0: i32) -> (i32, i32, i32) {
    %c0_i32 = arith.constant 0 : i32
    %c0_i32_0 = arith.constant 0 : i32
    %c0_i32_1 = arith.constant 0 : i32
    return %arg0, %c0_i32, %c0_i32_0 : i32, i32, i32
  }
}

module attributes {stable_mosaic.version = 11 : i64} {
  func.func @_stage2_kernel(%arg0: i32, %arg1: memref<16x512xf32, #tpu.memory_space<vmem>>, %arg2: memref<1x512xf32, #tpu.memory_space<vmem>>, %arg3: memref<1x512xf32, #tpu.memory_space<vmem>>, %arg4: memref<512x128xbf16, #tpu.memory_space<vmem>>, %arg5: memref<1x128xf32, #tpu.memory_space<vmem>>, %arg6: memref<16x128xf32, #tpu.memory_space<vmem>>) attributes {dimension_semantics = [#tpu.dimension_semantics<parallel>], iteration_bounds = array<i64: 3>, scalar_prefetch = 0 : i64, scratch_operands = 0 : i64, tpu.core_type = #tpu.core_type<tc>, window_params = [{transform_indices = @transform_0, window_bounds = array<i64: 16, 512>}, {pipeline_mode = #tpu.pipeline_mode<synchronous>, transform_indices = @transform_1, window_bounds = array<i64: 1, 512>}, {pipeline_mode = #tpu.pipeline_mode<synchronous>, transform_indices = @transform_2, window_bounds = array<i64: 1, 512>}, {pipeline_mode = #tpu.pipeline_mode<synchronous>, transform_indices = @transform_3, window_bounds = array<i64: 512, 128>}, {pipeline_mode = #tpu.pipeline_mode<synchronous>, transform_indices = @transform_4, window_bounds = array<i64: 1, 128>}, {transform_indices = @transform_5, window_bounds = array<i64: 16, 128>}]} {
    %c0 = arith.constant 0 : index
    %c0_0 = arith.constant 0 : index
    %0 = vector.load %arg1[%c0, %c0_0] : memref<16x512xf32, #tpu.memory_space<vmem>>, vector<16x512xf32>
    %c0_1 = arith.constant 0 : index
    %c0_2 = arith.constant 0 : index
    %1 = vector.load %arg2[%c0_1, %c0_2] : memref<1x512xf32, #tpu.memory_space<vmem>>, vector<1x512xf32>
    %2 = vector.broadcast %1 : vector<1x512xf32> to vector<16x512xf32>
    %3 = arith.mulf %0, %2 : vector<16x512xf32>
    %c0_3 = arith.constant 0 : index
    %c0_4 = arith.constant 0 : index
    %4 = vector.load %arg3[%c0_3, %c0_4] : memref<1x512xf32, #tpu.memory_space<vmem>>, vector<1x512xf32>
    %5 = vector.broadcast %4 : vector<1x512xf32> to vector<16x512xf32>
    %6 = arith.addf %3, %5 : vector<16x512xf32>
    %cst = arith.constant 0.000000e+00 : f32
    %7 = vector.broadcast %cst : f32 to vector<16x512xf32>
    %8 = arith.maximumf %6, %7 : vector<16x512xf32>
    %9 = arith.truncf %8 : vector<16x512xf32> to vector<16x512xbf16>
    %c0_5 = arith.constant 0 : index
    %c0_6 = arith.constant 0 : index
    %10 = vector.load %arg4[%c0_5, %c0_6] : memref<512x128xbf16, #tpu.memory_space<vmem>>, vector<512x128xbf16>
    %cst_7 = arith.constant dense<0.000000e+00> : vector<16x128xf32>
    %11 = tpu.matmul %9, %10, %cst_7 {dimension_numbers = #tpu.dot_dimension_numbers<[1], [0], [0], [1], [0, 0, 1, 1], [], []>} : vector<16x512xbf16>, vector<512x128xbf16>, vector<16x128xf32> -> vector<16x128xf32>
    %c0_8 = arith.constant 0 : index
    %c0_9 = arith.constant 0 : index
    %12 = vector.load %arg5[%c0_8, %c0_9] : memref<1x128xf32, #tpu.memory_space<vmem>>, vector<1x128xf32>
    %13 = vector.broadcast %12 : vector<1x128xf32> to vector<16x128xf32>
    %14 = arith.addf %11, %13 : vector<16x128xf32>
    %15 = arith.mulf %14, %14 : vector<16x128xf32>
    %cst_10 = arith.constant dense<0.000000e+00> : vector<16xf32>
    %16 = vector.multi_reduction <add>, %15, %cst_10 [1] : vector<16x128xf32> to vector<16xf32>
    %17 = vector.shape_cast %16 : vector<16xf32> to vector<16x1xf32>
    %cst_11 = arith.constant 1.000000e-24 : f32
    %18 = vector.broadcast %cst_11 : f32 to vector<16x1xf32>
    %19 = arith.maximumf %17, %18 : vector<16x1xf32>
    %20 = math.rsqrt %19 : vector<16x1xf32>
    %21 = vector.broadcast %20 : vector<16x1xf32> to vector<16x128xf32>
    %22 = arith.mulf %14, %21 : vector<16x128xf32>
    %c0_12 = arith.constant 0 : index
    %c0_13 = arith.constant 0 : index
    %23 = vector.load %arg6[%c0_12, %c0_13] : memref<16x128xf32, #tpu.memory_space<vmem>>, vector<16x128xf32>
    tpu.vector_store %arg6[%c0_12, %c0_13], %22 {strides = array<i32>} : memref<16x128xf32, #tpu.memory_space<vmem>>, vector<16x128xf32>,
    return
  }
  func.func @transform_0(%arg0: i32) -> (i32, i32) {
    %c0_i32 = arith.constant 0 : i32
    %c0_i32_0 = arith.constant 0 : i32
    return %arg0, %c0_i32 : i32, i32
  }
  func.func @transform_1(%arg0: i32) -> (i32, i32) {
    %c0_i32 = arith.constant 0 : i32
    %c0_i32_0 = arith.constant 0 : i32
    %c0_i32_1 = arith.constant 0 : i32
    return %c0_i32, %c0_i32_0 : i32, i32
  }
  func.func @transform_2(%arg0: i32) -> (i32, i32) {
    %c0_i32 = arith.constant 0 : i32
    %c0_i32_0 = arith.constant 0 : i32
    %c0_i32_1 = arith.constant 0 : i32
    return %c0_i32, %c0_i32_0 : i32, i32
  }
  func.func @transform_3(%arg0: i32) -> (i32, i32) {
    %c0_i32 = arith.constant 0 : i32
    %c0_i32_0 = arith.constant 0 : i32
    %c0_i32_1 = arith.constant 0 : i32
    return %c0_i32, %c0_i32_0 : i32, i32
  }
  func.func @transform_4(%arg0: i32) -> (i32, i32) {
    %c0_i32 = arith.constant 0 : i32
    %c0_i32_0 = arith.constant 0 : i32
    %c0_i32_1 = arith.constant 0 : i32
    return %c0_i32, %c0_i32_0 : i32, i32
  }
  func.func @transform_5(%arg0: i32) -> (i32, i32) {
    %c0_i32 = arith.constant 0 : i32
    %c0_i32_0 = arith.constant 0 : i32
    return %arg0, %c0_i32 : i32, i32
  }
}

</mosaic_0001>

<llo_original>
// kernel: projection_forward.2
$region0: #{projection_forward.2}
  #allocation0 [shape = 'u32[]', space=smem, size = 0x4, offset = 0x4, fixed_abs, tag = 'smem constant byte address 0x4 - core index']
  #allocation1 [shape = 'u32[144,128]{1,0:T(1,128)}', space=vmem, size = 0x12000, scoped, tag = 'internal scratch']
  %s0 = inlined_call_operand.vmem [shape: bf16[48,256], index: 0, kind: input, shape index: {}]
  %s1 = inlined_call_operand.vmem [shape: bf16[256,512], index: 1, kind: input, shape index: {}]
  %s2 = inlined_call_operand.vmem [shape: f32[48,512], index: 2, kind: output, shape index: {0}]
  %s3 = inlined_call_operand.vmem [shape: f32[3,1,512], index: 3, kind: output, shape index: {1}]
  %s4 = inlined_call_operand.vmem [shape: f32[3,1,512], index: 4, kind: output, shape index: {2}]
  %5 = xla_tuple %s2, %s3, %s4
  %s6 = sld [smem:[#allocation0]]
  $region57: #{projection_forward.2} parent=0
    _
  %s8 = ssub.s32 1, %s6
  %s9 = scalar_select 0, %s8, %s6
  loop: start=0, step=1, limit=5
  $region2: #{projection_forward.2} parent=0 // loop_pre_header
    _
  $region3: #{projection_forward.2} parent=0 // loop_header
    %s11 = sphi 0, %s15
    %p12 = scmp.ge.s32.totalorder %s11, 5
    %s21 = sphi 0, %s23
    %s24 = sphi 0, %s21
    %s25 = sphi 0, %s24
    %s41 = sphi 0, %s25
    %s45 = sphi 0, %s45
    %s47 = sphi 0, %s45
    %s48 = sphi 0, %s47
    %s62 = sphi 0, %s48
    %s68 = sphi 0, %s70
    %s71 = sphi 0, %s68
    %s72 = sphi 0, %s71
    %s88 = sphi 0, %s72
    %s94 = sphi 0, %s96
    %s97 = sphi 0, %s94
    %s98 = sphi 0, %s97
    %s114 = sphi 0, %s98
    %s120 = sphi 0, %s122
    %s123 = sphi 0, %s120
    %s124 = sphi 0, %s123
    %s140 = sphi 0, %s124
  $region4: #{projection_forward.2} parent=0 // loop_header_branch
    %14 = sbr.rel (%p12) target = $region8
  $region5: #{projection_forward.2} parent=0 // loop_body
    %s16 = ssub.s32 %s11, 1
    %s17 = ssub.s32 %s11, 2
    %s18 = sadd.s32 %s11, 1
    %s19 = ssub.s32 %s11, %s18
    %p20 = scmp.eq.s32.totalorder %s19, 0
    %s22 = sadd.s32 %s21, 1
    %s23 = scalar_select %p20, %s21, %s22
    %p26 = pneg %p20
    %p27 = scmp.eq.s32.totalorder %s11, 2
    %p28 = por %p26, %p27
    %p29 = scmp.ne.s32.totalorder %s21, %s24
    %p30 = scmp.eq.s32.totalorder %s11, 0
    %p31 = por %p29, %p30
    %p32 = scmp.ne.s32.totalorder %s21, %s24
    %p33 = scmp.eq.s32.totalorder %s16, 2
    %p34 = por %p32, %p33
    %p35 = scmp.ne.s32.totalorder %s24, %s25
    %p36 = scmp.eq.s32.totalorder %s16, 0
    %p37 = por %p35, %p36
    %p38 = scmp.ne.s32.totalorder %s24, %s25
    %p39 = scmp.eq.s32.totalorder %s17, 2
    %p40 = por %p38, %p39
    %p42 = scmp.ne.s32.totalorder %s25, %s41
    %p43 = scmp.eq.s32.totalorder %s17, 0
    %p44 = por %p42, %p43
    %s46 = sadd.s32 %s45, 1
    %p49 = scmp.eq.s32.totalorder %s11, 2
    %p50 = scmp.ne.s32.totalorder %s45, %s47
    %p51 = scmp.eq.s32.totalorder %s11, 0
    %p52 = por %p50, %p51
    %p53 = scmp.ne.s32.totalorder %s45, %s47
    %p54 = scmp.eq.s32.totalorder %s16, 2
    %p55 = por %p53, %p54
    %p56 = scmp.ne.s32.totalorder %s47, %s48
    %p57 = scmp.eq.s32.totalorder %s16, 0
    %p58 = por %p56, %p57
    %p59 = scmp.ne.s32.totalorder %s47, %s48
    %p60 = scmp.eq.s32.totalorder %s17, 2
    %p61 = por %p59, %p60
    %p63 = scmp.ne.s32.totalorder %s48, %s62
    %p64 = scmp.eq.s32.totalorder %s17, 0
    %p65 = por %p63, %p64
    %s66 = ssub.s32 %s11, %s18
    %p67 = scmp.eq.s32.totalorder %s66, 0
    %s69 = sadd.s32 %s68, 1
    %s70 = scalar_select %p67, %s68, %s69
    %p73 = pneg %p67
    %p74 = scmp.eq.s32.totalorder %s11, 2
    %p75 = por %p73, %p74
    %p76 = scmp.ne.s32.totalorder %s68, %s71
    %p77 = scmp.eq.s32.totalorder %s11, 0
    %p78 = por %p76, %p77
    %p79 = scmp.ne.s32.totalorder %s68, %s71
    %p80 = scmp.eq.s32.totalorder %s16, 2
    %p81 = por %p79, %p80
    %p82 = scmp.ne.s32.totalorder %s71, %s72
    %p83 = scmp.eq.s32.totalorder %s16, 0
    %p84 = por %p82, %p83
    %p85 = scmp.ne.s32.totalorder %s71, %s72
    %p86 = scmp.eq.s32.totalorder %s17, 2
    %p87 = por %p85, %p86
    %p89 = scmp.ne.s32.totalorder %s72, %s88
    %p90 = scmp.eq.s32.totalorder %s17, 0
    %p91 = por %p89, %p90
    %s92 = ssub.s32 %s11, %s18
    %p93 = scmp.eq.s32.totalorder %s92, 0
    %s95 = sadd.s32 %s94, 1
    %s96 = scalar_select %p93, %s94, %s95
    %p99 = pneg %p93
    %p100 = scmp.eq.s32.totalorder %s11, 2
    %p101 = por %p99, %p100
    %p102 = scmp.ne.s32.totalorder %s94, %s97
    %p103 = scmp.eq.s32.totalorder %s11, 0
    %p104 = por %p102, %p103
    %p105 = scmp.ne.s32.totalorder %s94, %s97
    %p106 = scmp.eq.s32.totalorder %s16, 2
    %p107 = por %p105, %p106
    %p108 = scmp.ne.s32.totalorder %s97, %s98
    %p109 = scmp.eq.s32.totalorder %s16, 0
    %p110 = por %p108, %p109
    %p111 = scmp.ne.s32.totalorder %s97, %s98
    %p112 = scmp.eq.s32.totalorder %s17, 2
    %p113 = por %p111, %p112
    %p115 = scmp.ne.s32.totalorder %s98, %s114
    %p116 = scmp.eq.s32.totalorder %s17, 0
    %p117 = por %p115, %p116
    %s118 = ssub.s32 %s11, %s18
    %p119 = scmp.eq.s32.totalorder %s118, 0
    %s121 = sadd.s32 %s120, 1
    %s122 = scalar_select %p119, %s120, %s121
    %p125 = pneg %p119
    %p126 = scmp.eq.s32.totalorder %s11, 2
    %p127 = por %p125, %p126
    %p128 = scmp.ne.s32.totalorder %s120, %s123
    %p129 = scmp.eq.s32.totalorder %s11, 0
    %p130 = por %p128, %p129
    %p131 = scmp.ne.s32.totalorder %s120, %s123
    %p132 = scmp.eq.s32.totalorder %s16, 2
    %p133 = por %p131, %p132
    %p134 = scmp.ne.s32.totalorder %s123, %s124
    %p135 = scmp.eq.s32.totalorder %s16, 0
    %p136 = por %p134, %p135
    %p137 = scmp.ne.s32.totalorder %s123, %s124
    %p138 = scmp.eq.s32.totalorder %s17, 2
    %p139 = por %p137, %p138
    %p141 = scmp.ne.s32.totalorder %s124, %s140
    %p142 = scmp.eq.s32.totalorder %s17, 0
    %p143 = por %p141, %p142
    %p144 = scmp.le.s32.totalorder 1, %s11
    %p145 = scmp.lt.s32.totalorder %s11, 4
    %p146 = pnand %p144, %p145
    %p147 = pneg %p146
    // Predicated region
    $region9: #{projection_forward.2} parent=5 // pred_check
      _
    $region10: #{projection_forward.2} parent=5 // pred_check_branch
      %149 = sbr.rel (%p146) target = $region12
    $region11: #{projection_forward.2} parent=5 // pred_region
      %s150 = ssub.s32 %s11, 1
      // Predicated region
      $region13: #{projection_forward.2} parent=11 // pred_check
        %p151 = pneg %p58
      $region14: #{projection_forward.2} parent=11 // pred_check_branch
        %153 = sbr.rel (%p151) target = $region16
      $region15: #{projection_forward.2} parent=11 // pred_region
        _
      $region16: #{projection_forward.2} parent=11 // pred_fallthru
        _
    $region12: #{projection_forward.2} parent=5 // pred_fallthru
      _
    %p154 = scmp.lt.s32.totalorder %s11, 3
    // Predicated region
    $region17: #{projection_forward.2} parent=5 // pred_check
      %p155 = pneg %p154
    $region18: #{projection_forward.2} parent=5 // pred_check_branch
      %157 = sbr.rel (%p155) target = $region20
    $region19: #{projection_forward.2} parent=5 // pred_region
      // Predicated region
      $region21: #{projection_forward.2} parent=19 // pred_check
        %p158 = pneg %p31
      $region22: #{projection_forward.2} parent=19 // pred_check_branch
        %160 = sbr.rel (%p158) target = $region24
      $region23: #{projection_forward.2} parent=19 // pred_region
        %s161 = smul.u32 2, %s11
        %p162 = scmp.lt.s32.totalorder %s161, 5
        %s163 = scalar_select %p162, %s161, 5
        %s164 = smul.addr %s163, 2
        %s165 = smul.addr %s164, 4
        %s166 = scalar_lea.vmem %s0, %s165
        %s167 = smul.u32 2, %s11
      $region24: #{projection_forward.2} parent=19 // pred_fallthru
        _
    $region20: #{projection_forward.2} parent=5 // pred_fallthru
      _
    %p168 = scmp.le.s32.totalorder 1, %s11
    %p169 = scmp.lt.s32.totalorder %s11, 4
    %p170 = pnand %p168, %p169
    %p171 = pneg %p170
    // Predicated region
    $region25: #{projection_forward.2} parent=5 // pred_check
      _
    $region26: #{projection_forward.2} parent=5 // pred_check_branch
      %173 = sbr.rel (%p170) target = $region28
    $region27: #{projection_forward.2} parent=5 // pred_region
      %s174 = ssub.s32 %s11, 1
      %s175 = smul.u32 2, %s16
      %p176 = scmp.lt.s32.totalorder %s175, 5
      %s177 = scalar_select %p176, %s175, 5
      %s178 = smul.addr %s177, 2
      %s179 = smul.addr %s178, 4
      %s180 = scalar_lea.vmem %s0, %s179
      %p181 = pneg %p37
      %p182 = pneg %p34
      %p183 = pneg %p58
      %p184 = pneg %p55
      %p185 = pneg %p84
      %p186 = pneg %p81
      %s187 = smul.u32 2, %s16
      %p188 = scmp.lt.s32.totalorder %s187, 5
      %s189 = scalar_select %p188, %s187, 5
      %s190 = smul.addr %s189, 4
      %s191 = smul.addr %s190, 8
      %s192 = scalar_lea.vmem %s2, %s191
      %p193 = pneg %p110
      %p194 = pneg %p107
      %p195 = scmp.lt.s32.totalorder %s16, 2
      %s196 = scalar_select %p195, %s16, 2
      %s197 = smul.addr %s196, 4
      %s198 = scalar_lea.vmem %s3, %s197
      %p199 = pneg %p136
      %p200 = pneg %p133
      %p201 = scmp.lt.s32.totalorder %s16, 2
      %s202 = scalar_select %p201, %s16, 2
      %s203 = smul.addr %s202, 4
      %s204 = scalar_lea.vmem %s4, %s203
      %s205 = smul.u32 2, %s16
      %p206 = scmp.lt.s32.totalorder %s205, 5
      %s207 = scalar_select %p206, %s205, 5
      %s208 = smul.addr %s207, 2
      %s209 = smul.addr %s208, 4
      %s210 = scalar_lea.vmem %s0, %s209
      %s211 = smul.u32 2, %s16
      %s212 = smul.u32 2, %s16
      %p213 = scmp.lt.s32.totalorder %s212, 5
      %s214 = scalar_select %p213, %s212, 5
      %s215 = smul.addr %s214, 4
      %s216 = smul.addr %s215, 8
      %s217 = scalar_lea.vmem %s2, %s216
      %s218 = smul.u32 2, %s16
      %p219 = scmp.lt.s32.totalorder %s16, 2
      %s220 = scalar_select %p219, %s16, 2
      %s221 = smul.addr %s220, 4
      %s222 = scalar_lea.vmem %s3, %s221
      %p223 = scmp.lt.s32.totalorder %s16, 2
      %s224 = scalar_select %p223, %s16, 2
      %s225 = smul.addr %s224, 4
      %s226 = scalar_lea.vmem %s4, %s225
      %v227 = vld [vmem:[%s210] sm:$0xff]
      %v228 = vld [vmem:[%s210 + $0x8] sm:$0xff]
      %v229 = vld [vmem:[%s1] sm:$0xff]
      %v230 = vld [vmem:[%s1 + $0x8] sm:$0xff]
      %v231 = vld [vmem:[%s1 + $0x10] sm:$0xff]
      %v232 = vld [vmem:[%s1 + $0x18] sm:$0xff]
      %v233 = vld [vmem:[%s1 + $0x20] sm:$0xff]
      %v234 = vld [vmem:[%s1 + $0x28] sm:$0xff]
      %v235 = vld [vmem:[%s1 + $0x30] sm:$0xff]
      %v236 = vld [vmem:[%s1 + $0x38] sm:$0xff]
      %v237 = vld [vmem:[%s1 + $0x40] sm:$0xff]
      %v238 = vld [vmem:[%s1 + $0x48] sm:$0xff]
      %v239 = vld [vmem:[%s1 + $0x50] sm:$0xff]
      %v240 = vld [vmem:[%s1 + $0x58] sm:$0xff]
      %v241 = vld [vmem:[%s1 + $0x60] sm:$0xff]
      %v242 = vld [vmem:[%s1 + $0x68] sm:$0xff]
      %v243 = vld [vmem:[%s1 + $0x70] sm:$0xff]
      %v244 = vld [vmem:[%s1 + $0x78] sm:$0xff]
      %v245 = vld [vmem:[%s1 + $0x80] sm:$0xff]
      %v246 = vld [vmem:[%s1 + $0x88] sm:$0xff]
      %v247 = vld [vmem:[%s1 + $0x90] sm:$0xff]
      %v248 = vld [vmem:[%s1 + $0x98] sm:$0xff]
      %v249 = vld [vmem:[%s1 + $0xa0] sm:$0xff]
      %v250 = vld [vmem:[%s1 + $0xa8] sm:$0xff]
      %v251 = vld [vmem:[%s1 + $0xb0] sm:$0xff]
      %v252 = vld [vmem:[%s1 + $0xb8] sm:$0xff]
      %v253 = vld [vmem:[%s1 + $0xc0] sm:$0xff]
      %v254 = vld [vmem:[%s1 + $0xc8] sm:$0xff]
      %v255 = vld [vmem:[%s1 + $0xd0] sm:$0xff]
      %v256 = vld [vmem:[%s1 + $0xd8] sm:$0xff]
      %v257 = vld [vmem:[%s1 + $0xe0] sm:$0xff]
      %v258 = vld [vmem:[%s1 + $0xe8] sm:$0xff]
      %v259 = vld [vmem:[%s1 + $0xf0] sm:$0xff]
      %v260 = vld [vmem:[%s1 + $0xf8] sm:$0xff]
      %v261 = vld [vmem:[%s1 + $0x100] sm:$0xff]
      %v262 = vld [vmem:[%s1 + $0x108] sm:$0xff]
      %v263 = vld [vmem:[%s1 + $0x110] sm:$0xff]
      %v264 = vld [vmem:[%s1 + $0x118] sm:$0xff]
      %v265 = vld [vmem:[%s1 + $0x120] sm:$0xff]
      %v266 = vld [vmem:[%s1 + $0x128] sm:$0xff]
      %v267 = vld [vmem:[%s1 + $0x130] sm:$0xff]
      %v268 = vld [vmem:[%s1 + $0x138] sm:$0xff]
      %v269 = vld [vmem:[%s1 + $0x140] sm:$0xff]
      %v270 = vld [vmem:[%s1 + $0x148] sm:$0xff]
      %v271 = vld [vmem:[%s1 + $0x150] sm:$0xff]
      %v272 = vld [vmem:[%s1 + $0x158] sm:$0xff]
      %v273 = vld [vmem:[%s1 + $0x160] sm:$0xff]
      %v274 = vld [vmem:[%s1 + $0x168] sm:$0xff]
      %v275 = vld [vmem:[%s1 + $0x170] sm:$0xff]
      %v276 = vld [vmem:[%s1 + $0x178] sm:$0xff]
      %v277 = vld [vmem:[%s1 + $0x180] sm:$0xff]
      %v278 = vld [vmem:[%s1 + $0x188] sm:$0xff]
      %v279 = vld [vmem:[%s1 + $0x190] sm:$0xff]
      %v280 = vld [vmem:[%s1 + $0x198] sm:$0xff]
      %v281 = vld [vmem:[%s1 + $0x1a0] sm:$0xff]
      %v282 = vld [vmem:[%s1 + $0x1a8] sm:$0xff]
      %v283 = vld [vmem:[%s1 + $0x1b0] sm:$0xff]
      %v284 = vld [vmem:[%s1 + $0x1b8] sm:$0xff]
      %v285 = vld [vmem:[%s1 + $0x1c0] sm:$0xff]
      %v286 = vld [vmem:[%s1 + $0x1c8] sm:$0xff]
      %v287 = vld [vmem:[%s1 + $0x1d0] sm:$0xff]
      %v288 = vld [vmem:[%s1 + $0x1d8] sm:$0xff]
      %v289 = vld [vmem:[%s1 + $0x1e0] sm:$0xff]
      %v290 = vld [vmem:[%s1 + $0x1e8] sm:$0xff]
      %v291 = vld [vmem:[%s1 + $0x1f0] sm:$0xff]
      %v292 = vld [vmem:[%s1 + $0x1f8] sm:$0xff]
      %v295 = vunpack.c.l.b16 %v227
      %v296 = vunpack.c.h.b16 %v227
      %v297 = vunpack.c.l.b16 %v228
      %v298 = vunpack.c.h.b16 %v228
      %v299 = vpack.c.b16 %v297, %v295
      %v300 = vpack.c.b16 %v298, %v296
      %v367 = vunpack.c.l.b16 %v229
      %v368 = vunpack.c.h.b16 %v229
      %v369 = vunpack.c.l.b16 %v230
      %v370 = vunpack.c.h.b16 %v230
      %v371 = vunpack.c.l.b16 %v231
      %v372 = vunpack.c.h.b16 %v231
      %v373 = vunpack.c.l.b16 %v232
      %v374 = vunpack.c.h.b16 %v232
      %v375 = vunpack.c.l.b16 %v233
      %v376 = vunpack.c.h.b16 %v233
      %v377 = vunpack.c.l.b16 %v234
      %v378 = vunpack.c.h.b16 %v234
      %v379 = vunpack.c.l.b16 %v235
      %v380 = vunpack.c.h.b16 %v235
      %v381 = vunpack.c.l.b16 %v236
      %v382 = vunpack.c.h.b16 %v236
      %v383 = vunpack.c.l.b16 %v237
      %v384 = vunpack.c.h.b16 %v237
      %v385 = vunpack.c.l.b16 %v238
      %v386 = vunpack.c.h.b16 %v238
      %v387 = vunpack.c.l.b16 %v239
      %v388 = vunpack.c.h.b16 %v239
      %v389 = vunpack.c.l.b16 %v240
      %v390 = vunpack.c.h.b16 %v240
      %v391 = vunpack.c.l.b16 %v241
      %v392 = vunpack.c.h.b16 %v241
      %v393 = vunpack.c.l.b16 %v242
      %v394 = vunpack.c.h.b16 %v242
      %v395 = vunpack.c.l.b16 %v243
      %v396 = vunpack.c.h.b16 %v243
      %v397 = vunpack.c.l.b16 %v244
      %v398 = vunpack.c.h.b16 %v244
      %v399 = vunpack.c.l.b16 %v245
      %v400 = vunpack.c.h.b16 %v245
      %v401 = vunpack.c.l.b16 %v246
      %v402 = vunpack.c.h.b16 %v246
      %v403 = vunpack.c.l.b16 %v247
      %v404 = vunpack.c.h.b16 %v247
      %v405 = vunpack.c.l.b16 %v248
      %v406 = vunpack.c.h.b16 %v248
      %v407 = vunpack.c.l.b16 %v249
      %v408 = vunpack.c.h.b16 %v249
      %v409 = vunpack.c.l.b16 %v250
      %v410 = vunpack.c.h.b16 %v250
      %v411 = vunpack.c.l.b16 %v251
      %v412 = vunpack.c.h.b16 %v251
      %v413 = vunpack.c.l.b16 %v252
      %v414 = vunpack.c.h.b16 %v252
      %v415 = vunpack.c.l.b16 %v253
      %v416 = vunpack.c.h.b16 %v253
      %v417 = vunpack.c.l.b16 %v254
      %v418 = vunpack.c.h.b16 %v254
      %v419 = vunpack.c.l.b16 %v255
      %v420 = vunpack.c.h.b16 %v255
      %v421 = vunpack.c.l.b16 %v256
      %v422 = vunpack.c.h.b16 %v256
      %v423 = vunpack.c.l.b16 %v257
      %v424 = vunpack.c.h.b16 %v257
      %v425 = vunpack.c.l.b16 %v258
      %v426 = vunpack.c.h.b16 %v258
      %v427 = vunpack.c.l.b16 %v259
      %v428 = vunpack.c.h.b16 %v259
      %v429 = vunpack.c.l.b16 %v260
      %v430 = vunpack.c.h.b16 %v260
      %v431 = vunpack.c.l.b16 %v261
      %v432 = vunpack.c.h.b16 %v261
      %v433 = vunpack.c.l.b16 %v262
      %v434 = vunpack.c.h.b16 %v262
      %v435 = vunpack.c.l.b16 %v263
      %v436 = vunpack.c.h.b16 %v263
      %v437 = vunpack.c.l.b16 %v264
      %v438 = vunpack.c.h.b16 %v264
      %v439 = vunpack.c.l.b16 %v265
      %v440 = vunpack.c.h.b16 %v265
      %v441 = vunpack.c.l.b16 %v266
      %v442 = vunpack.c.h.b16 %v266
      %v443 = vunpack.c.l.b16 %v267
      %v444 = vunpack.c.h.b16 %v267
      %v445 = vunpack.c.l.b16 %v268
      %v446 = vunpack.c.h.b16 %v268
      %v447 = vunpack.c.l.b16 %v269
      %v448 = vunpack.c.h.b16 %v269
      %v449 = vunpack.c.l.b16 %v270
      %v450 = vunpack.c.h.b16 %v270
      %v451 = vunpack.c.l.b16 %v271
      %v452 = vunpack.c.h.b16 %v271
      %v453 = vunpack.c.l.b16 %v272
      %v454 = vunpack.c.h.b16 %v272
      %v455 = vunpack.c.l.b16 %v273
      %v456 = vunpack.c.h.b16 %v273
      %v457 = vunpack.c.l.b16 %v274
      %v458 = vunpack.c.h.b16 %v274
      %v459 = vunpack.c.l.b16 %v275
      %v460 = vunpack.c.h.b16 %v275
      %v461 = vunpack.c.l.b16 %v276
      %v462 = vunpack.c.h.b16 %v276
      %v463 = vunpack.c.l.b16 %v277
      %v464 = vunpack.c.h.b16 %v277
      %v465 = vunpack.c.l.b16 %v278
      %v466 = vunpack.c.h.b16 %v278
      %v467 = vunpack.c.l.b16 %v279
      %v468 = vunpack.c.h.b16 %v279
      %v469 = vunpack.c.l.b16 %v280
      %v470 = vunpack.c.h.b16 %v280
      %v471 = vunpack.c.l.b16 %v281
      %v472 = vunpack.c.h.b16 %v281
      %v473 = vunpack.c.l.b16 %v282
      %v474 = vunpack.c.h.b16 %v282
      %v475 = vunpack.c.l.b16 %v283
      %v476 = vunpack.c.h.b16 %v283
      %v477 = vunpack.c.l.b16 %v284
      %v478 = vunpack.c.h.b16 %v284
      %v479 = vunpack.c.l.b16 %v285
      %v480 = vunpack.c.h.b16 %v285
      %v481 = vunpack.c.l.b16 %v286
      %v482 = vunpack.c.h.b16 %v286
      %v483 = vunpack.c.l.b16 %v287
      %v484 = vunpack.c.h.b16 %v287
      %v485 = vunpack.c.l.b16 %v288
      %v486 = vunpack.c.h.b16 %v288
      %v487 = vunpack.c.l.b16 %v289
      %v488 = vunpack.c.h.b16 %v289
      %v489 = vunpack.c.l.b16 %v290
      %v490 = vunpack.c.h.b16 %v290
      %v491 = vunpack.c.l.b16 %v291
      %v492 = vunpack.c.h.b16 %v291
      %v493 = vunpack.c.l.b16 %v292
      %v494 = vunpack.c.h.b16 %v292
      %v495 = vpack.c.b16 %v371, %v367
      %v496 = vpack.c.b16 %v372, %v368
      %v497 = vpack.c.b16 %v373, %v369
      %v498 = vpack.c.b16 %v374, %v370
      %v499 = vpack.c.b16 %v379, %v375
      %v500 = vpack.c.b16 %v380, %v376
      %v501 = vpack.c.b16 %v381, %v377
      %v502 = vpack.c.b16 %v382, %v378
      %v503 = vpack.c.b16 %v387, %v383
      %v504 = vpack.c.b16 %v388, %v384
      %v505 = vpack.c.b16 %v389, %v385
      %v506 = vpack.c.b16 %v390, %v386
      %v507 = vpack.c.b16 %v395, %v391
      %v508 = vpack.c.b16 %v396, %v392
      %v509 = vpack.c.b16 %v397, %v393
      %v510 = vpack.c.b16 %v398, %v394
      %v511 = vpack.c.b16 %v403, %v399
      %v512 = vpack.c.b16 %v404, %v400
      %v513 = vpack.c.b16 %v405, %v401
      %v514 = vpack.c.b16 %v406, %v402
      %v515 = vpack.c.b16 %v411, %v407
      %v516 = vpack.c.b16 %v412, %v408
      %v517 = vpack.c.b16 %v413, %v409
      %v518 = vpack.c.b16 %v414, %v410
      %v519 = vpack.c.b16 %v419, %v415
      %v520 = vpack.c.b16 %v420, %v416
      %v521 = vpack.c.b16 %v421, %v417
      %v522 = vpack.c.b16 %v422, %v418
      %v523 = vpack.c.b16 %v427, %v423
      %v524 = vpack.c.b16 %v428, %v424
      %v525 = vpack.c.b16 %v429, %v425
      %v526 = vpack.c.b16 %v430, %v426
      %v527 = vpack.c.b16 %v435, %v431
      %v528 = vpack.c.b16 %v436, %v432
      %v529 = vpack.c.b16 %v437, %v433
      %v530 = vpack.c.b16 %v438, %v434
      %v531 = vpack.c.b16 %v443, %v439
      %v532 = vpack.c.b16 %v444, %v440
      %v533 = vpack.c.b16 %v445, %v441
      %v534 = vpack.c.b16 %v446, %v442
      %v535 = vpack.c.b16 %v451, %v447
      %v536 = vpack.c.b16 %v452, %v448
      %v537 = vpack.c.b16 %v453, %v449
      %v538 = vpack.c.b16 %v454, %v450
      %v539 = vpack.c.b16 %v459, %v455
      %v540 = vpack.c.b16 %v460, %v456
      %v541 = vpack.c.b16 %v461, %v457
      %v542 = vpack.c.b16 %v462, %v458
      %v543 = vpack.c.b16 %v467, %v463
      %v544 = vpack.c.b16 %v468, %v464
      %v545 = vpack.c.b16 %v469, %v465
      %v546 = vpack.c.b16 %v470, %v466
      %v547 = vpack.c.b16 %v475, %v471
      %v548 = vpack.c.b16 %v476, %v472
      %v549 = vpack.c.b16 %v477, %v473
      %v550 = vpack.c.b16 %v478, %v474
      %v551 = vpack.c.b16 %v483, %v479
      %v552 = vpack.c.b16 %v484, %v480
      %v553 = vpack.c.b16 %v485, %v481
      %v554 = vpack.c.b16 %v486, %v482
      %v555 = vpack.c.b16 %v491, %v487
      %v556 = vpack.c.b16 %v492, %v488
      %v557 = vpack.c.b16 %v493, %v489
      %v558 = vpack.c.b16 %v494, %v490
      %623 = vmatprep.subr.bf16.mxu0 %v524
      %624 = vmatpush1.bf16.msra.mxu0 %v523
      %625 = vmatprep.subr.bf16.mxu0 %v520
      %626 = vmatpush1.bf16.msra.mxu0 %v519
      %627 = vmatprep.subr.bf16.mxu0 %v516
      %628 = vmatpush1.bf16.msra.mxu0 %v515
      %629 = vmatprep.subr.bf16.mxu0 %v512
      %630 = vmatpush1.bf16.msra.mxu0 %v511
      %631 = vmatprep.subr.bf16.mxu0 %v508
      %632 = vmatpush1.bf16.msra.mxu0 %v507
      %633 = vmatprep.subr.bf16.mxu0 %v504
      %634 = vmatpush1.bf16.msra.mxu0 %v503
      %635 = vmatprep.subr.bf16.mxu0 %v500
      %636 = vmatpush1.bf16.msra.mxu0 %v499
      %637 = vmatprep.subr.bf16.mxu0 %v496
      %638 = vmatpush1.bf16.msra.mxu0 %v495
      %639 = vmatprep.subr.bf16.mxu0 %v556
      %640 = vmatpush2.bf16.msra.mxu0 %v555
      %641 = vmatprep.subr.bf16.mxu0 %v552
      %642 = vmatpush2.bf16.msra.mxu0 %v551
      %643 = vmatprep.subr.bf16.mxu0 %v548
      %644 = vmatpush2.bf16.msra.mxu0 %v547
      %645 = vmatprep.subr.bf16.mxu0 %v544
      %646 = vmatpush2.bf16.msra.mxu0 %v543
      %647 = vmatprep.subr.bf16.mxu0 %v540
      %648 = vmatpush2.bf16.msra.mxu0 %v539
      %649 = vmatprep.subr.bf16.mxu0 %v536
      %650 = vmatpush2.bf16.msra.mxu0 %v535
      %651 = vmatprep.subr.bf16.mxu0 %v532
      %652 = vmatpush2.bf16.msra.mxu0 %v531
      %653 = vmatprep.subr.bf16.mxu0 %v528
      %654 = vmatpush2.bf16.msra.mxu0 %v527
      %655 = vmatprep.mubr.bf16.mxu0 %v300
      %656 = vmatmul.mubr.bf16.gmra.mxu0 %v299
      %v657 = vpop.f32.mrf.mxu0
      %v658 = vadd.f32 0.0, %v657
      %v659 = vpop.f32.mrf.mxu0
      %v660 = vadd.f32 0.0, %v659
      %v661 = vpop.f32.mrf.mxu0
      %v662 = vadd.f32 0.0, %v661
      %v663 = vpop.f32.mrf.mxu0
      %v664 = vadd.f32 0.0, %v663
      %665 = vdwg.mxu0
      %666 = vmatprep.subr.bf16.mxu0 %v526
      %667 = vmatpush1.bf16.msra.mxu0 %v525
      %668 = vmatprep.subr.bf16.mxu0 %v522
      %669 = vmatpush1.bf16.msra.mxu0 %v521
      %670 = vmatprep.subr.bf16.mxu0 %v518
      %671 = vmatpush1.bf16.msra.mxu0 %v517
      %672 = vmatprep.subr.bf16.mxu0 %v514
      %673 = vmatpush1.bf16.msra.mxu0 %v513
      %674 = vmatprep.subr.bf16.mxu0 %v510
      %675 = vmatpush1.bf16.msra.mxu0 %v509
      %676 = vmatprep.subr.bf16.mxu0 %v506
      %677 = vmatpush1.bf16.msra.mxu0 %v505
      %678 = vmatprep.subr.bf16.mxu0 %v502
      %679 = vmatpush1.bf16.msra.mxu0 %v501
      %680 = vmatprep.subr.bf16.mxu0 %v498
      %681 = vmatpush1.bf16.msra.mxu0 %v497
      %682 = vmatprep.subr.bf16.mxu0 %v558
      %683 = vmatpush2.bf16.msra.mxu0 %v557
      %684 = vmatprep.subr.bf16.mxu0 %v554
      %685 = vmatpush2.bf16.msra.mxu0 %v553
      %686 = vmatprep.subr.bf16.mxu0 %v550
      %687 = vmatpush2.bf16.msra.mxu0 %v549
      %688 = vmatprep.subr.bf16.mxu0 %v546
      %689 = vmatpush2.bf16.msra.mxu0 %v545
      %690 = vmatprep.subr.bf16.mxu0 %v542
      %691 = vmatpush2.bf16.msra.mxu0 %v541
      %692 = vmatprep.subr.bf16.mxu0 %v538
      %693 = vmatpush2.bf16.msra.mxu0 %v537
      %694 = vmatprep.subr.bf16.mxu0 %v534
      %695 = vmatpush2.bf16.msra.mxu0 %v533
      %696 = vmatprep.subr.bf16.mxu0 %v530
      %697 = vmatpush2.bf16.msra.mxu0 %v529
      %698 = vmatprep.mubr.bf16.mxu0 %v300
      %699 = vmatmul.mubr.bf16.gmra.mxu0 %v299
      %v700 = vpop.f32.mrf.mxu0
      %v701 = vadd.f32 0.0, %v700
      %v702 = vpop.f32.mrf.mxu0
      %v703 = vadd.f32 0.0, %v702
      %v704 = vpop.f32.mrf.mxu0
      %v705 = vadd.f32 0.0, %v704
      %v706 = vpop.f32.mrf.mxu0
      %v707 = vadd.f32 0.0, %v706
      %708 = vdwg.mxu0
      %709 = vst [vmem:[%s217] sm:$0xff] %v658
      %710 = vst [vmem:[%s217 + $0x8] sm:$0xff] %v660
      %711 = vst [vmem:[%s217 + $0x10] sm:$0xff] %v701
      %712 = vst [vmem:[%s217 + $0x18] sm:$0xff] %v703
      %713 = vst [vmem:[%s217 + $0x20] sm:$0xff] %v662
      %714 = vst [vmem:[%s217 + $0x28] sm:$0xff] %v664
      %715 = vst [vmem:[%s217 + $0x30] sm:$0xff] %v705
      %716 = vst [vmem:[%s217 + $0x38] sm:$0xff] %v707
      %v717 = vadd.f32 %v658, %v662
      %v718 = vrot.slane %v717, 4
      %v719 = vadd.f32 %v717, %v718
      %v720 = vrot.slane %v719, 2
      %v721 = vadd.f32 %v719, %v720
      %v722 = vrot.slane %v721, 1
      %v723 = vadd.f32 %v721, %v722
      %v724 = vadd.f32 %v660, %v664
      %v725 = vrot.slane %v724, 4
      %v726 = vadd.f32 %v724, %v725
      %v727 = vrot.slane %v726, 2
      %v728 = vadd.f32 %v726, %v727
      %v729 = vrot.slane %v728, 1
      %v730 = vadd.f32 %v728, %v729
      %v731 = vadd.f32 %v701, %v705
      %v732 = vrot.slane %v731, 4
      %v733 = vadd.f32 %v731, %v732
      %v734 = vrot.slane %v733, 2
      %v735 = vadd.f32 %v733, %v734
      %v736 = vrot.slane %v735, 1
      %v737 = vadd.f32 %v735, %v736
      %v738 = vadd.f32 %v703, %v707
      %v739 = vrot.slane %v738, 4
      %v740 = vadd.f32 %v738, %v739
      %v741 = vrot.slane %v740, 2
      %v742 = vadd.f32 %v740, %v741
      %v743 = vrot.slane %v742, 1
      %v744 = vadd.f32 %v742, %v743
      %v749 = vcombine.low %v723, %v730
      %v750 = vcombine.low %v737, %v744
      %v752 = vunpack.c.l.s4 1966171168
      %v753 = vunpack.c.0.s8 %v752
      %v754 = vlaneseq
      %v755 = vshrl.u32 %v754, 7
      %v756 = vsub.s32 %v753, %v755
      %v757 = vrot.slane %v749, %v756
      %v759 = vunpack.c.l.s4 1966171168
      %v760 = vunpack.c.0.s8 %v759
      %v761 = vlaneseq
      %v762 = vshrl.u32 %v761, 7
      %v763 = vsub.s32 %v760, %v762
      %v764 = vrot.slane %v750, %v763
      %v765 = vcombine.low %v757, %v764
      %v767 = vunpack.c.l.s4 1966171168
      %v768 = vunpack.c.0.s8 %v767
      %v769 = vlaneseq
      %v770 = vshrl.u32 %v769, 7
      %v771 = vsub.s32 %v768, %v770
      %v772 = vrot.slane %v765, %v771
      %v774 = vlaneseq
      %vm775 = vcmp.ge.s32.totalorder %v774, 0
      %vm776 = vcmp.lt.s32.totalorder %v774, 512
      %vm777 = vmand %vm775, %vm776
      %778 = vst.msk [vmem:[%s222] sm:$0xf] %vm777, %v772
      %v779 = vmul.f32 %v658, %v658
      %v780 = vmul.f32 %v660, %v660
      %v781 = vmul.f32 %v701, %v701
      %v782 = vmul.f32 %v703, %v703
      %v783 = vmul.f32 %v662, %v662
      %v784 = vmul.f32 %v664, %v664
      %v785 = vmul.f32 %v705, %v705
      %v786 = vmul.f32 %v707, %v707
      %v787 = vadd.f32 %v779, %v783
      %v788 = vrot.slane %v787, 4
      %v789 = vadd.f32 %v787, %v788
      %v790 = vrot.slane %v789, 2
      %v791 = vadd.f32 %v789, %v790
      %v792 = vrot.slane %v791, 1
      %v793 = vadd.f32 %v791, %v792
      %v794 = vadd.f32 %v780, %v784
      %v795 = vrot.slane %v794, 4
      %v796 = vadd.f32 %v794, %v795
      %v797 = vrot.slane %v796, 2
      %v798 = vadd.f32 %v796, %v797
      %v799 = vrot.slane %v798, 1
      %v800 = vadd.f32 %v798, %v799
      %v801 = vadd.f32 %v781, %v785
      %v802 = vrot.slane %v801, 4
      %v803 = vadd.f32 %v801, %v802
      %v804 = vrot.slane %v803, 2
      %v805 = vadd.f32 %v803, %v804
      %v806 = vrot.slane %v805, 1
      %v807 = vadd.f32 %v805, %v806
      %v808 = vadd.f32 %v782, %v786
      %v809 = vrot.slane %v808, 4
      %v810 = vadd.f32 %v808, %v809
      %v811 = vrot.slane %v810, 2
      %v812 = vadd.f32 %v810, %v811
      %v813 = vrot.slane %v812, 1
      %v814 = vadd.f32 %v812, %v813
      %v819 = vcombine.low %v793, %v800
      %v820 = vcombine.low %v807, %v814
      %v822 = vunpack.c.l.s4 1966171168
      %v823 = vunpack.c.0.s8 %v822
      %v824 = vlaneseq
      %v825 = vshrl.u32 %v824, 7
      %v826 = vsub.s32 %v823, %v825
      %v827 = vrot.slane %v819, %v826
      %v829 = vunpack.c.l.s4 1966171168
      %v830 = vunpack.c.0.s8 %v829
      %v831 = vlaneseq
      %v832 = vshrl.u32 %v831, 7
      %v833 = vsub.s32 %v830, %v832
      %v834 = vrot.slane %v820, %v833
      %v835 = vcombine.low %v827, %v834
      %v837 = vunpack.c.l.s4 1966171168
      %v838 = vunpack.c.0.s8 %v837
      %v839 = vlaneseq
      %v840 = vshrl.u32 %v839, 7
      %v841 = vsub.s32 %v838, %v840
      %v842 = vrot.slane %v835, %v841
      %844 = vst.msk [vmem:[%s226] sm:$0xf] %vm777, %v842
      %s845 = smul.u32 2, %s16
      %p846 = scmp.lt.s32.totalorder %s845, 5
      %s847 = scalar_select %p846, %s845, 5
      %s848 = smul.addr %s847, 4
      %s849 = smul.addr %s848, 8
      %s850 = scalar_lea.vmem %s2, %s849
      %p851 = scmp.lt.s32.totalorder %s16, 2
      %s852 = scalar_select %p851, %s16, 2
      %s853 = smul.addr %s852, 4
      %s854 = scalar_lea.vmem %s3, %s853
      %p855 = scmp.lt.s32.totalorder %s16, 2
      %s856 = scalar_select %p855, %s16, 2
      %s857 = smul.addr %s856, 4
      %s858 = scalar_lea.vmem %s4, %s857
      // Predicated region
      $region29: #{projection_forward.2} parent=27 // pred_check
        %p859 = pneg %p81
      $region30: #{projection_forward.2} parent=27 // pred_check_branch
        %861 = sbr.rel (%p859) target = $region32
      $region31: #{projection_forward.2} parent=27 // pred_region
        %s862 = smul.u32 2, %s16
      $region32: #{projection_forward.2} parent=27 // pred_fallthru
        _
      // Predicated region
      $region33: #{projection_forward.2} parent=27 // pred_check
        %p863 = pneg %p107
      $region34: #{projection_forward.2} parent=27 // pred_check_branch
        %865 = sbr.rel (%p863) target = $region36
      $region35: #{projection_forward.2} parent=27 // pred_region
        _
      $region36: #{projection_forward.2} parent=27 // pred_fallthru
        _
      // Predicated region
      $region37: #{projection_forward.2} parent=27 // pred_check
        %p866 = pneg %p133
      $region38: #{projection_forward.2} parent=27 // pred_check_branch
        %868 = sbr.rel (%p866) target = $region40
      $region39: #{projection_forward.2} parent=27 // pred_region
        _
      $region40: #{projection_forward.2} parent=27 // pred_fallthru
        _
    $region28: #{projection_forward.2} parent=5 // pred_fallthru
      _
    %p869 = scmp.le.s32.totalorder 2, %s11
    // Predicated region
    $region41: #{projection_forward.2} parent=5 // pred_check
      %p870 = pneg %p869
    $region42: #{projection_forward.2} parent=5 // pred_check_branch
      %872 = sbr.rel (%p870) target = $region44
    $region43: #{projection_forward.2} parent=5 // pred_region
      %s873 = ssub.s32 %s11, 2
      // Predicated region
      $region45: #{projection_forward.2} parent=43 // pred_check
        %p874 = pneg %p87
      $region46: #{projection_forward.2} parent=43 // pred_check_branch
        %876 = sbr.rel (%p874) target = $region48
      $region47: #{projection_forward.2} parent=43 // pred_region
        %s877 = smul.u32 2, %s17
        %p878 = scmp.lt.s32.totalorder %s877, 5
        %s879 = scalar_select %p878, %s877, 5
        %s880 = smul.addr %s879, 4
        %s881 = smul.addr %s880, 8
        %s882 = scalar_lea.vmem %s2, %s881
      $region48: #{projection_forward.2} parent=43 // pred_fallthru
        _
      // Predicated region
      $region49: #{projection_forward.2} parent=43 // pred_check
        %p883 = pneg %p113
      $region50: #{projection_forward.2} parent=43 // pred_check_branch
        %885 = sbr.rel (%p883) target = $region52
      $region51: #{projection_forward.2} parent=43 // pred_region
        %p886 = scmp.lt.s32.totalorder %s17, 2
        %s887 = scalar_select %p886, %s17, 2
        %s888 = smul.addr %s887, 4
        %s889 = scalar_lea.vmem %s3, %s888
      $region52: #{projection_forward.2} parent=43 // pred_fallthru
        _
      // Predicated region
      $region53: #{projection_forward.2} parent=43 // pred_check
        %p890 = pneg %p139
      $region54: #{projection_forward.2} parent=43 // pred_check_branch
        %892 = sbr.rel (%p890) target = $region56
      $region55: #{projection_forward.2} parent=43 // pred_region
        %p893 = scmp.lt.s32.totalorder %s17, 2
        %s894 = scalar_select %p893, %s17, 2
        %s895 = smul.addr %s894, 4
        %s896 = scalar_lea.vmem %s4, %s895
      $region56: #{projection_forward.2} parent=43 // pred_fallthru
        _
    $region44: #{projection_forward.2} parent=5 // pred_fallthru
      _
  $region6: #{projection_forward.2} parent=0 // loop_footer
    %s15 = sadd.s32 1, %s11
  $region7: #{projection_forward.2} parent=0 // loop_footer_branch
    %10 = sbr.rel target = $region3
  $region8: #{projection_forward.2} parent=0 // loop_exit
    _

// kernel: projection_forward.3
$region0: #{projection_forward.3}
  #allocation0 [shape = 'u32[]', space=smem, size = 0x4, offset = 0x4, fixed_abs, tag = 'smem constant byte address 0x4 - core index']
  #allocation1 [shape = 'u32[144,128]{1,0:T(1,128)}', space=vmem, size = 0x12000, scoped, tag = 'internal scratch']
  %s0 = inlined_call_operand.vmem [shape: f32[48,512], index: 0, kind: input, shape index: {}]
  %s1 = inlined_call_operand.vmem [shape: f32[1,512], index: 1, kind: input, shape index: {}]
  %s2 = inlined_call_operand.vmem [shape: f32[1,512], index: 2, kind: input, shape index: {}]
  %s3 = inlined_call_operand.vmem [shape: bf16[512,128], index: 3, kind: input, shape index: {}]
  %s4 = inlined_call_operand.vmem [shape: f32[1,128], index: 4, kind: input, shape index: {}]
  %s5 = inlined_call_operand.vmem [shape: f32[48,128], index: 5, kind: output, shape index: {}]
  %s6 = sld [smem:[#allocation0]]
  $region53: #{projection_forward.3} parent=0
    _
  %s8 = ssub.s32 1, %s6
  %s9 = scalar_select 0, %s8, %s6
  loop: start=0, step=1, limit=5
  $region2: #{projection_forward.3} parent=0 // loop_pre_header
    _
  $region3: #{projection_forward.3} parent=0 // loop_header
    %s11 = sphi 0, %s15
    %p12 = scmp.ge.s32.totalorder %s11, 5
    %s21 = sphi 0, %s23
    %s24 = sphi 0, %s21
    %s25 = sphi 0, %s24
    %s41 = sphi 0, %s25
    %s45 = sphi 0, %s45
    %s47 = sphi 0, %s45
    %s48 = sphi 0, %s47
    %s62 = sphi 0, %s48
    %s66 = sphi 0, %s66
    %s68 = sphi 0, %s66
    %s69 = sphi 0, %s68
    %s83 = sphi 0, %s69
    %s87 = sphi 0, %s87
    %s89 = sphi 0, %s87
    %s90 = sphi 0, %s89
    %s104 = sphi 0, %s90
    %s108 = sphi 0, %s108
    %s110 = sphi 0, %s108
    %s111 = sphi 0, %s110
    %s125 = sphi 0, %s111
    %s131 = sphi 0, %s133
    %s134 = sphi 0, %s131
    %s135 = sphi 0, %s134
    %s151 = sphi 0, %s135
  $region4: #{projection_forward.3} parent=0 // loop_header_branch
    %14 = sbr.rel (%p12) target = $region8
  $region5: #{projection_forward.3} parent=0 // loop_body
    %s16 = ssub.s32 %s11, 1
    %s17 = ssub.s32 %s11, 2
    %s18 = sadd.s32 %s11, 1
    %s19 = ssub.s32 %s11, %s18
    %p20 = scmp.eq.s32.totalorder %s19, 0
    %s22 = sadd.s32 %s21, 1
    %s23 = scalar_select %p20, %s21, %s22
    %p26 = pneg %p20
    %p27 = scmp.eq.s32.totalorder %s11, 2
    %p28 = por %p26, %p27
    %p29 = scmp.ne.s32.totalorder %s21, %s24
    %p30 = scmp.eq.s32.totalorder %s11, 0
    %p31 = por %p29, %p30
    %p32 = scmp.ne.s32.totalorder %s21, %s24
    %p33 = scmp.eq.s32.totalorder %s16, 2
    %p34 = por %p32, %p33
    %p35 = scmp.ne.s32.totalorder %s24, %s25
    %p36 = scmp.eq.s32.totalorder %s16, 0
    %p37 = por %p35, %p36
    %p38 = scmp.ne.s32.totalorder %s24, %s25
    %p39 = scmp.eq.s32.totalorder %s17, 2
    %p40 = por %p38, %p39
    %p42 = scmp.ne.s32.totalorder %s25, %s41
    %p43 = scmp.eq.s32.totalorder %s17, 0
    %p44 = por %p42, %p43
    %s46 = sadd.s32 %s45, 1
    %p49 = scmp.eq.s32.totalorder %s11, 2
    %p50 = scmp.ne.s32.totalorder %s45, %s47
    %p51 = scmp.eq.s32.totalorder %s11, 0
    %p52 = por %p50, %p51
    %p53 = scmp.ne.s32.totalorder %s45, %s47
    %p54 = scmp.eq.s32.totalorder %s16, 2
    %p55 = por %p53, %p54
    %p56 = scmp.ne.s32.totalorder %s47, %s48
    %p57 = scmp.eq.s32.totalorder %s16, 0
    %p58 = por %p56, %p57
    %p59 = scmp.ne.s32.totalorder %s47, %s48
    %p60 = scmp.eq.s32.totalorder %s17, 2
    %p61 = por %p59, %p60
    %p63 = scmp.ne.s32.totalorder %s48, %s62
    %p64 = scmp.eq.s32.totalorder %s17, 0
    %p65 = por %p63, %p64
    %s67 = sadd.s32 %s66, 1
    %p70 = scmp.eq.s32.totalorder %s11, 2
    %p71 = scmp.ne.s32.totalorder %s66, %s68
    %p72 = scmp.eq.s32.totalorder %s11, 0
    %p73 = por %p71, %p72
    %p74 = scmp.ne.s32.totalorder %s66, %s68
    %p75 = scmp.eq.s32.totalorder %s16, 2
    %p76 = por %p74, %p75
    %p77 = scmp.ne.s32.totalorder %s68, %s69
    %p78 = scmp.eq.s32.totalorder %s16, 0
    %p79 = por %p77, %p78
    %p80 = scmp.ne.s32.totalorder %s68, %s69
    %p81 = scmp.eq.s32.totalorder %s17, 2
    %p82 = por %p80, %p81
    %p84 = scmp.ne.s32.totalorder %s69, %s83
    %p85 = scmp.eq.s32.totalorder %s17, 0
    %p86 = por %p84, %p85
    %s88 = sadd.s32 %s87, 1
    %p91 = scmp.eq.s32.totalorder %s11, 2
    %p92 = scmp.ne.s32.totalorder %s87, %s89
    %p93 = scmp.eq.s32.totalorder %s11, 0
    %p94 = por %p92, %p93
    %p95 = scmp.ne.s32.totalorder %s87, %s89
    %p96 = scmp.eq.s32.totalorder %s16, 2
    %p97 = por %p95, %p96
    %p98 = scmp.ne.s32.totalorder %s89, %s90
    %p99 = scmp.eq.s32.totalorder %s16, 0
    %p100 = por %p98, %p99
    %p101 = scmp.ne.s32.totalorder %s89, %s90
    %p102 = scmp.eq.s32.totalorder %s17, 2
    %p103 = por %p101, %p102
    %p105 = scmp.ne.s32.totalorder %s90, %s104
    %p106 = scmp.eq.s32.totalorder %s17, 0
    %p107 = por %p105, %p106
    %s109 = sadd.s32 %s108, 1
    %p112 = scmp.eq.s32.totalorder %s11, 2
    %p113 = scmp.ne.s32.totalorder %s108, %s110
    %p114 = scmp.eq.s32.totalorder %s11, 0
    %p115 = por %p113, %p114
    %p116 = scmp.ne.s32.totalorder %s108, %s110
    %p117 = scmp.eq.s32.totalorder %s16, 2
    %p118 = por %p116, %p117
    %p119 = scmp.ne.s32.totalorder %s110, %s111
    %p120 = scmp.eq.s32.totalorder %s16, 0
    %p121 = por %p119, %p120
    %p122 = scmp.ne.s32.totalorder %s110, %s111
    %p123 = scmp.eq.s32.totalorder %s17, 2
    %p124 = por %p122, %p123
    %p126 = scmp.ne.s32.totalorder %s111, %s125
    %p127 = scmp.eq.s32.totalorder %s17, 0
    %p128 = por %p126, %p127
    %s129 = ssub.s32 %s11, %s18
    %p130 = scmp.eq.s32.totalorder %s129, 0
    %s132 = sadd.s32 %s131, 1
    %s133 = scalar_select %p130, %s131, %s132
    %p136 = pneg %p130
    %p137 = scmp.eq.s32.totalorder %s11, 2
    %p138 = por %p136, %p137
    %p139 = scmp.ne.s32.totalorder %s131, %s134
    %p140 = scmp.eq.s32.totalorder %s11, 0
    %p141 = por %p139, %p140
    %p142 = scmp.ne.s32.totalorder %s131, %s134
    %p143 = scmp.eq.s32.totalorder %s16, 2
    %p144 = por %p142, %p143
    %p145 = scmp.ne.s32.totalorder %s134, %s135
    %p146 = scmp.eq.s32.totalorder %s16, 0
    %p147 = por %p145, %p146
    %p148 = scmp.ne.s32.totalorder %s134, %s135
    %p149 = scmp.eq.s32.totalorder %s17, 2
    %p150 = por %p148, %p149
    %p152 = scmp.ne.s32.totalorder %s135, %s151
    %p153 = scmp.eq.s32.totalorder %s17, 0
    %p154 = por %p152, %p153
    %p155 = scmp.le.s32.totalorder 1, %s11
    %p156 = scmp.lt.s32.totalorder %s11, 4
    %p157 = pnand %p155, %p156
    %p158 = pneg %p157
    // Predicated region
    $region9: #{projection_forward.3} parent=5 // pred_check
      _
    $region10: #{projection_forward.3} parent=5 // pred_check_branch
      %160 = sbr.rel (%p157) target = $region12
    $region11: #{projection_forward.3} parent=5 // pred_region
      %s161 = ssub.s32 %s11, 1
      // Predicated region
      $region13: #{projection_forward.3} parent=11 // pred_check
        %p162 = pneg %p58
      $region14: #{projection_forward.3} parent=11 // pred_check_branch
        %164 = sbr.rel (%p162) target = $region16
      $region15: #{projection_forward.3} parent=11 // pred_region
        _
      $region16: #{projection_forward.3} parent=11 // pred_fallthru
        _
      // Predicated region
      $region17: #{projection_forward.3} parent=11 // pred_check
        %p165 = pneg %p79
      $region18: #{projection_forward.3} parent=11 // pred_check_branch
        %167 = sbr.rel (%p165) target = $region20
      $region19: #{projection_forward.3} parent=11 // pred_region
        _
      $region20: #{projection_forward.3} parent=11 // pred_fallthru
        _
      // Predicated region
      $region21: #{projection_forward.3} parent=11 // pred_check
        %p168 = pneg %p100
      $region22: #{projection_forward.3} parent=11 // pred_check_branch
        %170 = sbr.rel (%p168) target = $region24
      $region23: #{projection_forward.3} parent=11 // pred_region
        _
      $region24: #{projection_forward.3} parent=11 // pred_fallthru
        _
      // Predicated region
      $region25: #{projection_forward.3} parent=11 // pred_check
        %p171 = pneg %p121
      $region26: #{projection_forward.3} parent=11 // pred_check_branch
        %173 = sbr.rel (%p171) target = $region28
      $region27: #{projection_forward.3} parent=11 // pred_region
        _
      $region28: #{projection_forward.3} parent=11 // pred_fallthru
        _
    $region12: #{projection_forward.3} parent=5 // pred_fallthru
      _
    %p174 = scmp.lt.s32.totalorder %s11, 3
    // Predicated region
    $region29: #{projection_forward.3} parent=5 // pred_check
      %p175 = pneg %p174
    $region30: #{projection_forward.3} parent=5 // pred_check_branch
      %177 = sbr.rel (%p175) target = $region32
    $region31: #{projection_forward.3} parent=5 // pred_region
      // Predicated region
      $region33: #{projection_forward.3} parent=31 // pred_check
        %p178 = pneg %p31
      $region34: #{projection_forward.3} parent=31 // pred_check_branch
        %180 = sbr.rel (%p178) target = $region36
      $region35: #{projection_forward.3} parent=31 // pred_region
        %s181 = smul.u32 2, %s11
        %p182 = scmp.lt.s32.totalorder %s181, 5
        %s183 = scalar_select %p182, %s181, 5
        %s184 = smul.addr %s183, 4
        %s185 = smul.addr %s184, 8
        %s186 = scalar_lea.vmem %s0, %s185
        %s187 = smul.u32 2, %s11
      $region36: #{projection_forward.3} parent=31 // pred_fallthru
        _
    $region32: #{projection_forward.3} parent=5 // pred_fallthru
      _
    %p188 = scmp.le.s32.totalorder 1, %s11
    %p189 = scmp.lt.s32.totalorder %s11, 4
    %p190 = pnand %p188, %p189
    %p191 = pneg %p190
    // Predicated region
    $region37: #{projection_forward.3} parent=5 // pred_check
      _
    $region38: #{projection_forward.3} parent=5 // pred_check_branch
      %193 = sbr.rel (%p190) target = $region40
    $region39: #{projection_forward.3} parent=5 // pred_region
      %s194 = ssub.s32 %s11, 1
      %s195 = smul.u32 2, %s16
      %p196 = scmp.lt.s32.totalorder %s195, 5
      %s197 = scalar_select %p196, %s195, 5
      %s198 = smul.addr %s197, 4
      %s199 = smul.addr %s198, 8
      %s200 = scalar_lea.vmem %s0, %s199
      %p201 = pneg %p37
      %p202 = pneg %p34
      %p203 = pneg %p58
      %p204 = pneg %p55
      %p205 = pneg %p79
      %p206 = pneg %p76
      %p207 = pneg %p100
      %p208 = pneg %p97
      %p209 = pneg %p121
      %p210 = pneg %p118
      %p211 = pneg %p147
      %p212 = pneg %p144
      %s213 = smul.u32 2, %s16
      %p214 = scmp.lt.s32.totalorder %s213, 5
      %s215 = scalar_select %p214, %s213, 5
      %s216 = smul.addr %s215, 8
      %s217 = scalar_lea.vmem %s5, %s216
      %s218 = smul.u32 2, %s16
      %p219 = scmp.lt.s32.totalorder %s218, 5
      %s220 = scalar_select %p219, %s218, 5
      %s221 = smul.addr %s220, 4
      %s222 = smul.addr %s221, 8
      %s223 = scalar_lea.vmem %s0, %s222
      %s224 = smul.u32 2, %s16
      %s225 = smul.u32 2, %s16
      %p226 = scmp.lt.s32.totalorder %s225, 5
      %s227 = scalar_select %p226, %s225, 5
      %s228 = smul.addr %s227, 8
      %s229 = scalar_lea.vmem %s5, %s228
      %s230 = smul.u32 2, %s16
      %v232 = vld [vmem:[%s223] sm:$0xff]
      %v233 = vld [vmem:[%s223 + $0x8] sm:$0xff]
      %v234 = vld [vmem:[%s223 + $0x10] sm:$0xff]
      %v235 = vld [vmem:[%s223 + $0x18] sm:$0xff]
      %v236 = vld [vmem:[%s223 + $0x20] sm:$0xff]
      %v237 = vld [vmem:[%s223 + $0x28] sm:$0xff]
      %v238 = vld [vmem:[%s223 + $0x30] sm:$0xff]
      %v239 = vld [vmem:[%s223 + $0x38] sm:$0xff]
      %v240 = vld [vmem:[%s1] sm:$0xf]
      %v242 = vlaneseq
      %v243 = vshrl.u32 %v242, 7
      %v244 = vsub.s32 0, %v243
      %v245 = vrot.slane %v240, %v244
      %v246 = vlaneseq
      %v247 = vshrl.u32 %v246, 7
      %v248 = vsub.s32 1, %v247
      %v249 = vrot.slane %v240, %v248
      %v250 = vlaneseq
      %v251 = vshrl.u32 %v250, 7
      %v252 = vsub.s32 2, %v251
      %v253 = vrot.slane %v240, %v252
      %v254 = vlaneseq
      %v255 = vshrl.u32 %v254, 7
      %v256 = vsub.s32 3, %v255
      %v257 = vrot.slane %v240, %v256
      %v262 = vmul.f32 %v232, %v245
      %v263 = vmul.f32 %v233, %v249
      %v264 = vmul.f32 %v234, %v253
      %v265 = vmul.f32 %v235, %v257
      %v266 = vmul.f32 %v236, %v245
      %v267 = vmul.f32 %v237, %v249
      %v268 = vmul.f32 %v238, %v253
      %v269 = vmul.f32 %v239, %v257
      %v270 = vld [vmem:[%s2] sm:$0xf]
      %v272 = vlaneseq
      %v273 = vshrl.u32 %v272, 7
      %v274 = vsub.s32 0, %v273
      %v275 = vrot.slane %v270, %v274
      %v276 = vlaneseq
      %v277 = vshrl.u32 %v276, 7
      %v278 = vsub.s32 1, %v277
      %v279 = vrot.slane %v270, %v278
      %v280 = vlaneseq
      %v281 = vshrl.u32 %v280, 7
      %v282 = vsub.s32 2, %v281
      %v283 = vrot.slane %v270, %v282
      %v284 = vlaneseq
      %v285 = vshrl.u32 %v284, 7
      %v286 = vsub.s32 3, %v285
      %v287 = vrot.slane %v270, %v286
      %v292 = vadd.f32 %v262, %v275
      %v293 = vadd.f32 %v263, %v279
      %v294 = vadd.f32 %v264, %v283
      %v295 = vadd.f32 %v265, %v287
      %v296 = vadd.f32 %v266, %v275
      %v297 = vadd.f32 %v267, %v279
      %v298 = vadd.f32 %v268, %v283
      %v299 = vadd.f32 %v269, %v287
      %v300 = vmax.f32 %v292, 0.0
      %v301 = vmax.f32 %v293, 0.0
      %v302 = vmax.f32 %v294, 0.0
      %v303 = vmax.f32 %v295, 0.0
      %v304 = vmax.f32 %v296, 0.0
      %v305 = vmax.f32 %v297, 0.0
      %v306 = vmax.f32 %v298, 0.0
      %v307 = vmax.f32 %v299, 0.0
      %v308 = vpack.c.bf16 %v304, %v300
      %v309 = vpack.c.bf16 %v305, %v301
      %v310 = vpack.c.bf16 %v306, %v302
      %v311 = vpack.c.bf16 %v307, %v303
      %v312 = vld [vmem:[%s3] sm:$0xf]
      %v313 = vld [vmem:[%s3 + $0x4] sm:$0xf]
      %v314 = vld [vmem:[%s3 + $0x8] sm:$0xf]
      %v315 = vld [vmem:[%s3 + $0xc] sm:$0xf]
      %v316 = vld [vmem:[%s3 + $0x10] sm:$0xf]
      %v317 = vld [vmem:[%s3 + $0x14] sm:$0xf]
      %v318 = vld [vmem:[%s3 + $0x18] sm:$0xf]
      %v319 = vld [vmem:[%s3 + $0x1c] sm:$0xf]
      %v320 = vld [vmem:[%s3 + $0x20] sm:$0xf]
      %v321 = vld [vmem:[%s3 + $0x24] sm:$0xf]
      %v322 = vld [vmem:[%s3 + $0x28] sm:$0xf]
      %v323 = vld [vmem:[%s3 + $0x2c] sm:$0xf]
      %v324 = vld [vmem:[%s3 + $0x30] sm:$0xf]
      %v325 = vld [vmem:[%s3 + $0x34] sm:$0xf]
      %v326 = vld [vmem:[%s3 + $0x38] sm:$0xf]
      %v327 = vld [vmem:[%s3 + $0x3c] sm:$0xf]
      %v328 = vld [vmem:[%s3 + $0x40] sm:$0xf]
      %v329 = vld [vmem:[%s3 + $0x44] sm:$0xf]
      %v330 = vld [vmem:[%s3 + $0x48] sm:$0xf]
      %v331 = vld [vmem:[%s3 + $0x4c] sm:$0xf]
      %v332 = vld [vmem:[%s3 + $0x50] sm:$0xf]
      %v333 = vld [vmem:[%s3 + $0x54] sm:$0xf]
      %v334 = vld [vmem:[%s3 + $0x58] sm:$0xf]
      %v335 = vld [vmem:[%s3 + $0x5c] sm:$0xf]
      %v336 = vld [vmem:[%s3 + $0x60] sm:$0xf]
      %v337 = vld [vmem:[%s3 + $0x64] sm:$0xf]
      %v338 = vld [vmem:[%s3 + $0x68] sm:$0xf]
      %v339 = vld [vmem:[%s3 + $0x6c] sm:$0xf]
      %v340 = vld [vmem:[%s3 + $0x70] sm:$0xf]
      %v341 = vld [vmem:[%s3 + $0x74] sm:$0xf]
      %v342 = vld [vmem:[%s3 + $0x78] sm:$0xf]
      %v343 = vld [vmem:[%s3 + $0x7c] sm:$0xf]
      %v344 = vld [vmem:[%s3 + $0x80] sm:$0xf]
      %v345 = vld [vmem:[%s3 + $0x84] sm:$0xf]
      %v346 = vld [vmem:[%s3 + $0x88] sm:$0xf]
      %v347 = vld [vmem:[%s3 + $0x8c] sm:$0xf]
      %v348 = vld [vmem:[%s3 + $0x90] sm:$0xf]
      %v349 = vld [vmem:[%s3 + $0x94] sm:$0xf]
      %v350 = vld [vmem:[%s3 + $0x98] sm:$0xf]
      %v351 = vld [vmem:[%s3 + $0x9c] sm:$0xf]
      %v352 = vld [vmem:[%s3 + $0xa0] sm:$0xf]
      %v353 = vld [vmem:[%s3 + $0xa4] sm:$0xf]
      %v354 = vld [vmem:[%s3 + $0xa8] sm:$0xf]
      %v355 = vld [vmem:[%s3 + $0xac] sm:$0xf]
      %v356 = vld [vmem:[%s3 + $0xb0] sm:$0xf]
      %v357 = vld [vmem:[%s3 + $0xb4] sm:$0xf]
      %v358 = vld [vmem:[%s3 + $0xb8] sm:$0xf]
      %v359 = vld [vmem:[%s3 + $0xbc] sm:$0xf]
      %v360 = vld [vmem:[%s3 + $0xc0] sm:$0xf]
      %v361 = vld [vmem:[%s3 + $0xc4] sm:$0xf]
      %v362 = vld [vmem:[%s3 + $0xc8] sm:$0xf]
      %v363 = vld [vmem:[%s3 + $0xcc] sm:$0xf]
      %v364 = vld [vmem:[%s3 + $0xd0] sm:$0xf]
      %v365 = vld [vmem:[%s3 + $0xd4] sm:$0xf]
      %v366 = vld [vmem:[%s3 + $0xd8] sm:$0xf]
      %v367 = vld [vmem:[%s3 + $0xdc] sm:$0xf]
      %v368 = vld [vmem:[%s3 + $0xe0] sm:$0xf]
      %v369 = vld [vmem:[%s3 + $0xe4] sm:$0xf]
      %v370 = vld [vmem:[%s3 + $0xe8] sm:$0xf]
      %v371 = vld [vmem:[%s3 + $0xec] sm:$0xf]
      %v372 = vld [vmem:[%s3 + $0xf0] sm:$0xf]
      %v373 = vld [vmem:[%s3 + $0xf4] sm:$0xf]
      %v374 = vld [vmem:[%s3 + $0xf8] sm:$0xf]
      %v375 = vld [vmem:[%s3 + $0xfc] sm:$0xf]
      %v376 = vld [vmem:[%s4] sm:$0x1]
      %v378 = vlaneseq
      %v379 = vshrl.u32 %v378, 7
      %v380 = vsub.s32 0, %v379
      %v381 = vrot.slane %v376, %v380
      %v447 = vunpack.c.l.b16 %v312
      %v448 = vunpack.c.l.b16 %v313
      %v449 = vunpack.c.l.b16 %v314
      %v450 = vunpack.c.l.b16 %v315
      %v451 = vunpack.c.l.b16 %v316
      %v452 = vunpack.c.l.b16 %v317
      %v453 = vunpack.c.l.b16 %v318
      %v454 = vunpack.c.l.b16 %v319
      %v455 = vunpack.c.l.b16 %v320
      %v456 = vunpack.c.l.b16 %v321
      %v457 = vunpack.c.l.b16 %v322
      %v458 = vunpack.c.l.b16 %v323
      %v459 = vunpack.c.l.b16 %v324
      %v460 = vunpack.c.l.b16 %v325
      %v461 = vunpack.c.l.b16 %v326
      %v462 = vunpack.c.l.b16 %v327
      %v463 = vunpack.c.l.b16 %v328
      %v464 = vunpack.c.l.b16 %v329
      %v465 = vunpack.c.l.b16 %v330
      %v466 = vunpack.c.l.b16 %v331
      %v467 = vunpack.c.l.b16 %v332
      %v468 = vunpack.c.l.b16 %v333
      %v469 = vunpack.c.l.b16 %v334
      %v470 = vunpack.c.l.b16 %v335
      %v471 = vunpack.c.l.b16 %v336
      %v472 = vunpack.c.l.b16 %v337
      %v473 = vunpack.c.l.b16 %v338
      %v474 = vunpack.c.l.b16 %v339
      %v475 = vunpack.c.l.b16 %v340
      %v476 = vunpack.c.l.b16 %v341
      %v477 = vunpack.c.l.b16 %v342
      %v478 = vunpack.c.l.b16 %v343
      %v479 = vunpack.c.l.b16 %v344
      %v480 = vunpack.c.l.b16 %v345
      %v481 = vunpack.c.l.b16 %v346
      %v482 = vunpack.c.l.b16 %v347
      %v483 = vunpack.c.l.b16 %v348
      %v484 = vunpack.c.l.b16 %v349
      %v485 = vunpack.c.l.b16 %v350
      %v486 = vunpack.c.l.b16 %v351
      %v487 = vunpack.c.l.b16 %v352
      %v488 = vunpack.c.l.b16 %v353
      %v489 = vunpack.c.l.b16 %v354
      %v490 = vunpack.c.l.b16 %v355
      %v491 = vunpack.c.l.b16 %v356
      %v492 = vunpack.c.l.b16 %v357
      %v493 = vunpack.c.l.b16 %v358
      %v494 = vunpack.c.l.b16 %v359
      %v495 = vunpack.c.l.b16 %v360
      %v496 = vunpack.c.l.b16 %v361
      %v497 = vunpack.c.l.b16 %v362
      %v498 = vunpack.c.l.b16 %v363
      %v499 = vunpack.c.l.b16 %v364
      %v500 = vunpack.c.l.b16 %v365
      %v501 = vunpack.c.l.b16 %v366
      %v502 = vunpack.c.l.b16 %v367
      %v503 = vunpack.c.l.b16 %v368
      %v504 = vunpack.c.l.b16 %v369
      %v505 = vunpack.c.l.b16 %v370
      %v506 = vunpack.c.l.b16 %v371
      %v507 = vunpack.c.l.b16 %v372
      %v508 = vunpack.c.l.b16 %v373
      %v509 = vunpack.c.l.b16 %v374
      %v510 = vunpack.c.l.b16 %v375
      %v511 = vpack.c.b16 %v448, %v447
      %v512 = vpack.c.b16 %v450, %v449
      %v513 = vpack.c.b16 %v452, %v451
      %v514 = vpack.c.b16 %v454, %v453
      %v515 = vpack.c.b16 %v456, %v455
      %v516 = vpack.c.b16 %v458, %v457
      %v517 = vpack.c.b16 %v460, %v459
      %v518 = vpack.c.b16 %v462, %v461
      %v519 = vpack.c.b16 %v464, %v463
      %v520 = vpack.c.b16 %v466, %v465
      %v521 = vpack.c.b16 %v468, %v467
      %v522 = vpack.c.b16 %v470, %v469
      %v523 = vpack.c.b16 %v472, %v471
      %v524 = vpack.c.b16 %v474, %v473
      %v525 = vpack.c.b16 %v476, %v475
      %v526 = vpack.c.b16 %v478, %v477
      %v527 = vpack.c.b16 %v480, %v479
      %v528 = vpack.c.b16 %v482, %v481
      %v529 = vpack.c.b16 %v484, %v483
      %v530 = vpack.c.b16 %v486, %v485
      %v531 = vpack.c.b16 %v488, %v487
      %v532 = vpack.c.b16 %v490, %v489
      %v533 = vpack.c.b16 %v492, %v491
      %v534 = vpack.c.b16 %v494, %v493
      %v535 = vpack.c.b16 %v496, %v495
      %v536 = vpack.c.b16 %v498, %v497
      %v537 = vpack.c.b16 %v500, %v499
      %v538 = vpack.c.b16 %v502, %v501
      %v539 = vpack.c.b16 %v504, %v503
      %v540 = vpack.c.b16 %v506, %v505
      %v541 = vpack.c.b16 %v508, %v507
      %v542 = vpack.c.b16 %v510, %v509
      %575 = vmatprep.subr.bf16.mxu0 0
      %576 = vmatpush1.bf16.msra.mxu0 %v518
      %577 = vmatprep.subr.bf16.mxu0 0
      %578 = vmatpush1.bf16.msra.mxu0 %v517
      %579 = vmatprep.subr.bf16.mxu0 0
      %580 = vmatpush1.bf16.msra.mxu0 %v516
      %581 = vmatprep.subr.bf16.mxu0 0
      %582 = vmatpush1.bf16.msra.mxu0 %v515
      %583 = vmatprep.subr.bf16.mxu0 0
      %584 = vmatpush1.bf16.msra.mxu0 %v514
      %585 = vmatprep.subr.bf16.mxu0 0
      %586 = vmatpush1.bf16.msra.mxu0 %v513
      %587 = vmatprep.subr.bf16.mxu0 0
      %588 = vmatpush1.bf16.msra.mxu0 %v512
      %589 = vmatprep.subr.bf16.mxu0 0
      %590 = vmatpush1.bf16.msra.mxu0 %v511
      %591 = vmatprep.subr.bf16.mxu0 0
      %592 = vmatpush2.bf16.msra.mxu0 %v526
      %593 = vmatprep.subr.bf16.mxu0 0
      %594 = vmatpush2.bf16.msra.mxu0 %v525
      %595 = vmatprep.subr.bf16.mxu0 0
      %596 = vmatpush2.bf16.msra.mxu0 %v524
      %597 = vmatprep.subr.bf16.mxu0 0
      %598 = vmatpush2.bf16.msra.mxu0 %v523
      %599 = vmatprep.subr.bf16.mxu0 0
      %600 = vmatpush2.bf16.msra.mxu0 %v522
      %601 = vmatprep.subr.bf16.mxu0 0
      %602 = vmatpush2.bf16.msra.mxu0 %v521
      %603 = vmatprep.subr.bf16.mxu0 0
      %604 = vmatpush2.bf16.msra.mxu0 %v520
      %605 = vmatprep.subr.bf16.mxu0 0
      %606 = vmatpush2.bf16.msra.mxu0 %v519
      %607 = vmatprep.mubr.bf16.mxu0 %v309
      %608 = vmatmul.mubr.bf16.gmra.mxu0 %v308
      %v609 = vpop.f32.mrf.mxu0
      %v610 = vadd.f32 %v381, %v609
      %v611 = vpop.f32.mrf.mxu0
      %v612 = vpop.f32.mrf.mxu0
      %v613 = vadd.f32 %v381, %v612
      %v614 = vpop.f32.mrf.mxu0
      %615 = vdwg.mxu0
      %616 = vmatprep.subr.bf16.mxu0 0
      %617 = vmatpush1.bf16.msra.mxu0 %v534
      %618 = vmatprep.subr.bf16.mxu0 0
      %619 = vmatpush1.bf16.msra.mxu0 %v533
      %620 = vmatprep.subr.bf16.mxu0 0
      %621 = vmatpush1.bf16.msra.mxu0 %v532
      %622 = vmatprep.subr.bf16.mxu0 0
      %623 = vmatpush1.bf16.msra.mxu0 %v531
      %624 = vmatprep.subr.bf16.mxu0 0
      %625 = vmatpush1.bf16.msra.mxu0 %v530
      %626 = vmatprep.subr.bf16.mxu0 0
      %627 = vmatpush1.bf16.msra.mxu0 %v529
      %628 = vmatprep.subr.bf16.mxu0 0
      %629 = vmatpush1.bf16.msra.mxu0 %v528
      %630 = vmatprep.subr.bf16.mxu0 0
      %631 = vmatpush1.bf16.msra.mxu0 %v527
      %632 = vmatprep.subr.bf16.mxu0 0
      %633 = vmatpush2.bf16.msra.mxu0 %v542
      %634 = vmatprep.subr.bf16.mxu0 0
      %635 = vmatpush2.bf16.msra.mxu0 %v541
      %636 = vmatprep.subr.bf16.mxu0 0
      %637 = vmatpush2.bf16.msra.mxu0 %v540
      %638 = vmatprep.subr.bf16.mxu0 0
      %639 = vmatpush2.bf16.msra.mxu0 %v539
      %640 = vmatprep.subr.bf16.mxu0 0
      %641 = vmatpush2.bf16.msra.mxu0 %v538
      %642 = vmatprep.subr.bf16.mxu0 0
      %643 = vmatpush2.bf16.msra.mxu0 %v537
      %644 = vmatprep.subr.bf16.mxu0 0
      %645 = vmatpush2.bf16.msra.mxu0 %v536
      %646 = vmatprep.subr.bf16.mxu0 0
      %647 = vmatpush2.bf16.msra.mxu0 %v535
      %648 = vmatprep.mubr.bf16.mxu0 %v311
      %649 = vmatmul.mubr.bf16.gmra.mxu0 %v310
      %v650 = vpop.f32.mrf.mxu0
      %v651 = vadd.f32 %v610, %v650
      %v652 = vpop.f32.mrf.mxu0
      %v653 = vpop.f32.mrf.mxu0
      %v654 = vadd.f32 %v613, %v653
      %v655 = vpop.f32.mrf.mxu0
      %656 = vdwg.mxu0
      %v657 = vmul.f32 %v651, %v651
      %v658 = vmul.f32 %v654, %v654
      %659 = vadd.xlane.f32.xlu0 %v657
      %v660 = vpop.xlane.xlu0 %659
      %661 = vadd.xlane.f32.xlu0 %v658
      %v662 = vpop.xlane.xlu0 %661
      %v663 = vmax.f32 %v660, 1e-24
      %v664 = vmax.f32 %v662, 1e-24
      %v665 = vrsqrt.pop %v663
      %v666 = vrsqrt.pop %v664
      %v667 = vmul.f32 %v651, %v665
      %v668 = vmul.f32 %v654, %v666
      %669 = vst [vmem:[%s229] sm:$0xff] %v667
      %670 = vst [vmem:[%s229 + $0x8] sm:$0xff] %v668
      %s671 = smul.u32 2, %s16
      %p672 = scmp.lt.s32.totalorder %s671, 5
      %s673 = scalar_select %p672, %s671, 5
      %s674 = smul.addr %s673, 8
      %s675 = scalar_lea.vmem %s5, %s674
      // Predicated region
      $region41: #{projection_forward.3} parent=39 // pred_check
        %p676 = pneg %p144
      $region42: #{projection_forward.3} parent=39 // pred_check_branch
        %678 = sbr.rel (%p676) target = $region44
      $region43: #{projection_forward.3} parent=39 // pred_region
        %s679 = smul.u32 2, %s16
      $region44: #{projection_forward.3} parent=39 // pred_fallthru
        _
    $region40: #{projection_forward.3} parent=5 // pred_fallthru
      _
    %p680 = scmp.le.s32.totalorder 2, %s11
    // Predicated region
    $region45: #{projection_forward.3} parent=5 // pred_check
      %p681 = pneg %p680
    $region46: #{projection_forward.3} parent=5 // pred_check_branch
      %683 = sbr.rel (%p681) target = $region48
    $region47: #{projection_forward.3} parent=5 // pred_region
      %s684 = ssub.s32 %s11, 2
      // Predicated region
      $region49: #{projection_forward.3} parent=47 // pred_check
        %p685 = pneg %p150
      $region50: #{projection_forward.3} parent=47 // pred_check_branch
        %687 = sbr.rel (%p685) target = $region52
      $region51: #{projection_forward.3} parent=47 // pred_region
        %s688 = smul.u32 2, %s17
        %p689 = scmp.lt.s32.totalorder %s688, 5
        %s690 = scalar_select %p689, %s688, 5
        %s691 = smul.addr %s690, 8
        %s692 = scalar_lea.vmem %s5, %s691
      $region52: #{projection_forward.3} parent=47 // pred_fallthru
        _
    $region48: #{projection_forward.3} parent=5 // pred_fallthru
      _
  $region6: #{projection_forward.3} parent=0 // loop_footer
    %s15 = sadd.s32 1, %s11
  $region7: #{projection_forward.3} parent=0 // loop_footer_branch
    %10 = sbr.rel target = $region3
  $region8: #{projection_forward.3} parent=0 // loop_exit
    _

</llo_original>
